<compile_context>
chip_gen: v7x
topology: tpu7x:2x2x1
jax: 0.10.0
libtpu: 0.0.40
codegen_flags: <defaults>
</compile_context>

<pallas_src>
import math
import functools
import numpy as np
import jax
import jax.numpy as jnp
from jax import lax
from jax.experimental import pallas as pl
from jax.experimental.pallas import tpu as pltpu


# ----------------------------------------------------------------------------
# Fused Pallas kernel
# ----------------------------------------------------------------------------
def srgnn_fused_kernel(A_in_ref, A_out_ref, h0_ref, alias_ref, last_oh_ref, mask_ref,
                       w_big_ref, b_big_ref, b_iah_ref, b_ioh_ref,
                       w_gi_in_ref, w_gi_out_ref, b_gi_ref,
                       w2_ref, b2_ref, b1_ref, w3_ref,
                       w_ht_ref, wt_a_ref, bt_ref,
                       out_ref, *, step):
    TB, L, D = h0_ref.shape

    A_in = A_in_ref[...]            # [TB, L, L]  (matmul dtype)
    A_out = A_out_ref[...]          # [TB, L, L]

    # Weights have constant block indices -> resident across grid steps; load once.
    w_big = w_big_ref[...]          # [D, 5D] = [w_ei | w_eo | w_hh(r|i|n)]
    b_big = b_big_ref[...]          # [1, 5D] (f32)
    b_iah, b_ioh = b_iah_ref[...], b_ioh_ref[...]
    w_gi_in, w_gi_out = w_gi_in_ref[...], w_gi_out_ref[...]   # [D, 3D] each
    b_gi = b_gi_ref[...]            # [1, 3D]

    def mxu(x, w):
        # MXU matmul in the weight dtype (bf16 on v6e/v7x), f32 accumulation.
        return jnp.dot(x.astype(w.dtype), w, preferred_element_type=jnp.float32)

    def prop(a, x):                 # batched [TB,L,L] @ [TB,L,D]
        return jnp.einsum('blm,bmd->bld', a, x.astype(a.dtype),
                          preferred_element_type=jnp.float32)

    # Hidden state stays VMEM-resident in f32 across the unrolled propagation steps.
    h = h0_ref[...].astype(jnp.float32)

    # ---- GNN propagation (unrolled; step is a static Python int) ----
    for _ in range(step):
        hflat = h.reshape(TB * L, D)
        # One fused (D, 5D) matmul: edge_in | edge_out | gh(r|i|n).
        big = mxu(hflat, w_big) + b_big                                # [TB*L, 5D] f32
        edge_in = big[:, 0:D].reshape(TB, L, D)
        edge_out = big[:, D:2 * D].reshape(TB, L, D)
        gh = big[:, 2 * D:]                                            # [TB*L, 3D]

        input_in = (prop(A_in, edge_in) + b_iah).reshape(TB * L, D)
        input_out = (prop(A_out, edge_out) + b_ioh).reshape(TB * L, D)

        gi = mxu(input_in, w_gi_in) + mxu(input_out, w_gi_out) + b_gi  # [TB*L, 3D]

        gate_ri = jax.nn.sigmoid(gi[:, :2 * D] + gh[:, :2 * D])
        reset_gate = gate_ri[:, :D]
        input_gate = gate_ri[:, D:]
        new_gate = jnp.tanh(gi[:, 2 * D:] + reset_gate * gh[:, 2 * D:])
        h = ((1.0 - input_gate) * hflat + input_gate * new_gate).reshape(TB, L, D)

    # ---- alias gather + ht selection (one-hot matmul / masked reduce, no dynamic gather) ----
    alias = alias_ref[...]                                             # [TB, L] int32
    sel = (lax.broadcasted_iota(jnp.int32, (TB, L, L), 2)
           == alias[:, :, None]).astype(jnp.float32)                   # [TB, L, L]
    # TODO(synk): gather einsum uses default f32 matmul precision (matched the reference
    # within tolerance); pin precision explicitly if bit-exactness is ever required.
    seq = jnp.einsum('btl,bld->btd', sel, h,
                     preferred_element_type=jnp.float32)               # [TB, L, D]

    last_oh = last_oh_ref[...]                                         # [TB, L] f32 (host-built)
    ht = jnp.sum(last_oh[:, :, None] * seq, axis=1)                    # [TB, D]

    # ---- attention readout + output transform ----
    ht_big = mxu(ht, w_ht_ref[...])                                    # [TB, 2D] = [q1_pre | ht@wt_h]
    q1 = ht_big[:, :D] + b1_ref[...]
    ht_wt = ht_big[:, D:]

    q2 = (mxu(seq.reshape(TB * L, D), w2_ref[...]) + b2_ref[...]).reshape(TB, L, D)
    s = jax.nn.sigmoid(q1[:, None, :] + q2)                            # [TB, L, D]
    # linear_three (D -> 1) as VPU multiply + lane reduce (avoids a 1-wide MXU pass)
    alpha = jnp.sum(s * w3_ref[...][0], axis=-1, keepdims=True)        # [TB, L, 1]

    mask = mask_ref[...]                                               # [TB, L]
    a = jnp.sum(alpha * seq * mask[:, :, None], axis=1)                # [TB, D]

    out_ref[...] = mxu(a, wt_a_ref[...]) + ht_wt + bt_ref[...]


# ----------------------------------------------------------------------------
# Wrapper
# ----------------------------------------------------------------------------
def _const_spec(shape):
    nd = len(shape)
    return pl.BlockSpec(shape, lambda b, _nd=nd: (0,) * _nd)


def _choose_tb(B, L, D):
    """Batch tile: as many sessions per grid step as a ~20 MiB working set allows."""
    # Per-session bytes: double-buffered input blocks (A_in/A_out, hidden0, alias/last/mask, out)
    # plus live f32 intermediates inside the kernel (rough upper bound).
    per_session = 4 * (5 * L * L + 20 * L * D + 8 * L + 4 * D)
    budget = 20 << 20
    tb = min(B, 512, max(1, budget // per_session))
    if B >= 16:
        # Keep >= 2 grid steps so dimension_semantics=("parallel",) can shard
        # across both TensorCores on v7x.
        tb = min(tb, (B + 1) // 2)
    if tb < B:
        tb = max(8, (tb // 8) * 8)   # tiled batch blocks must be sublane-aligned
    return tb


def srgnn_forward_pallas(params, A_in, A_out, hidden0, alias_i32, last_oh, mask_f, step,
                         *, matmul_dtype=jnp.float32):
    B, L, D = hidden0.shape

    # --- pad L to a multiple of 8 so (TB, L, D) <-> (TB*L, D) reshapes are layout no-ops ---
    L_pad = ((L + 7) // 8) * 8
    dl = L_pad - L
    if dl:
        A_in = jnp.pad(A_in, ((0, 0), (0, dl), (0, dl)))
        A_out = jnp.pad(A_out, ((0, 0), (0, dl), (0, dl)))
        hidden0 = jnp.pad(hidden0, ((0, 0), (0, dl), (0, 0)))
        alias_i32 = jnp.pad(alias_i32, ((0, 0), (0, dl)))
        last_oh = jnp.pad(last_oh, ((0, 0), (0, dl)))
        mask_f = jnp.pad(mask_f, ((0, 0), (0, dl)))

    TB = _choose_tb(B, L_pad, D)
    B_pad = -(-B // TB) * TB
    pad = B_pad - B
    if pad:
        A_in = jnp.pad(A_in, ((0, pad), (0, 0), (0, 0)))
        A_out = jnp.pad(A_out, ((0, pad), (0, 0), (0, 0)))
        hidden0 = jnp.pad(hidden0, ((0, pad), (0, 0), (0, 0)))
        alias_i32 = jnp.pad(alias_i32, ((0, pad), (0, 0)))
        last_oh = jnp.pad(last_oh, ((0, pad), (0, 0)))
        mask_f = jnp.pad(mask_f, ((0, pad), (0, 0)))

    # MXU operands in matmul_dtype (bf16 halves DMA bytes + ~2x MXU on v6e/v7x); biases,
    # mask and all accumulation stay f32.
    mdt = matmul_dtype
    A_in = A_in.astype(mdt)
    A_out = A_out.astype(mdt)
    hidden0 = hidden0.astype(mdt)

    weights = [
        params['w_big'].astype(mdt), params['b_big'],
        params['b_iah'], params['b_ioh'],
        params['w_gi_in'].astype(mdt), params['w_gi_out'].astype(mdt), params['b_gi'],
        params['w2_t'].astype(mdt), params['b2'], params['b1'], params['w3_row'],
        params['w_ht'].astype(mdt), params['wt_a'].astype(mdt), params['bt'],
    ]
    # TODO(synk): constant-index weight blocks could use pipeline_mode=pl.Buffered(1) to cut
    # double-buffered VMEM on v7x at large D; negligible at these sizes so left default.

    out = pl.pallas_call(
        functools.partial(srgnn_fused_kernel, step=step),
        out_shape=jax.ShapeDtypeStruct((B_pad, D), jnp.float32),
        grid=(B_pad // TB,),
        in_specs=[
            pl.BlockSpec((TB, L_pad, L_pad), lambda b: (b, 0, 0)),   # A_in
            pl.BlockSpec((TB, L_pad, L_pad), lambda b: (b, 0, 0)),   # A_out
            pl.BlockSpec((TB, L_pad, D), lambda b: (b, 0, 0)),       # hidden0
            pl.BlockSpec((TB, L_pad), lambda b: (b, 0)),             # alias_inputs
            pl.BlockSpec((TB, L_pad), lambda b: (b, 0)),             # last-position one-hot
            pl.BlockSpec((TB, L_pad), lambda b: (b, 0)),             # mask (float)
        ] + [_const_spec(w.shape) for w in weights],
        out_specs=pl.BlockSpec((TB, D), lambda b: (b, 0)),
        compiler_params=pltpu.CompilerParams(
            dimension_semantics=("parallel",),
            vmem_limit_bytes=40 * 1024 * 1024),   # above v5e's 16 MiB scoped default
    )(A_in, A_out, hidden0, alias_i32, last_oh, mask_f, *weights)
    return out[:B]


# ----------------------------------------------------------------------------
# Host-side graph construction (mirrors SRGNNRec._get_slice; data-dependent,
# np.unique + python loops -> stays on host)
# ----------------------------------------------------------------------------
def get_slice(item_seq, node_count):
    item_seq = np.asarray(item_seq)
    mask = item_seq < node_count
    items, A, alias_inputs = [], [], []
    max_n_node = item_seq.shape[1]
    for u_input in item_seq:
        node = np.unique(u_input)
        items.append(node.tolist() + (max_n_node - len(node)) * [0])
        u_A = np.zeros((max_n_node, max_n_node))
        for i in np.arange(len(u_input) - 1):
            if u_input[i + 1] == 0:
                break
            u = np.where(node == u_input[i])[0][0]
            v = np.where(node == u_input[i + 1])[0][0]
            u_A[u][v] = 1
        u_sum_in = np.sum(u_A, 0)
        u_sum_in[np.where(u_sum_in == 0)] = 1
        u_A_in = np.divide(u_A, u_sum_in)
        u_sum_out = np.sum(u_A, 1)
        u_sum_out[np.where(u_sum_out == 0)] = 1
        u_A_out = np.divide(u_A.transpose(), u_sum_out)
        u_A = np.concatenate([u_A_in, u_A_out]).transpose()
        A.append(u_A)
        alias_inputs.append([np.where(node == i)[0][0] for i in u_input])
    return (np.asarray(alias_inputs, dtype=np.int32),
            np.asarray(A, dtype=np.float32),
            np.asarray(items, dtype=np.int32),
            mask)


# ----------------------------------------------------------------------------
# Full forward (single fused Pallas kernel for the hot path)
# ----------------------------------------------------------------------------
def srgnn_forward(params, item_seq, item_seq_len, node_count, step, matmul_dtype=jnp.float32):
    alias_inputs, A, items, mask = get_slice(item_seq, node_count)
    B, L = np.asarray(item_seq).shape
    # TODO(synk): embedding row gather is a data-dependent HBM gather; kept in XLA.
    hidden0 = jnp.take(params['emb'], jnp.asarray(items), axis=0)        # [B, L, D]
    A = jnp.asarray(A)
    A_in = A[:, :, :L]
    A_out = A[:, :, L:2 * L]
    alias_i32 = jnp.asarray(alias_inputs, dtype=jnp.int32)
    last = np.asarray(item_seq_len, dtype=np.int64) - 1
    last_oh = jnp.asarray((np.arange(L)[None, :] == last[:, None]).astype(np.float32))
    mask_f = jnp.asarray(mask, dtype=jnp.float32)
    return srgnn_forward_pallas(params, A_in, A_out, hidden0, alias_i32, last_oh, mask_f,
                                step, matmul_dtype=matmul_dtype)


# ----------------------------------------------------------------------------
# Pure-JAX reference (for correctness check)
# ----------------------------------------------------------------------------
def srgnn_forward_ref(params, item_seq, item_seq_len, node_count, step):
    alias_inputs, A, items, mask = get_slice(item_seq, node_count)
    B, L = np.asarray(item_seq).shape
    A = jnp.asarray(A)
    hidden = jnp.take(params['emb'], jnp.asarray(items), axis=0)
    for _ in range(step):
        edge_in = hidden @ params['w_ei_t'] + params['b_ei']
        edge_out = hidden @ params['w_eo_t'] + params['b_eo']
        input_in = jnp.matmul(A[:, :, :L], edge_in) + params['b_iah']
        input_out = jnp.matmul(A[:, :, L:2 * L], edge_out) + params['b_ioh']
        inputs = jnp.concatenate([input_in, input_out], axis=2)
        gi = inputs @ params['w_ih_t'] + params['b_ih']
        gh = hidden @ params['w_hh_t'] + params['b_hh']
        i_r, i_i, i_n = jnp.split(gi, 3, axis=2)
        h_r, h_i, h_n = jnp.split(gh, 3, axis=2)
        reset_gate = jax.nn.sigmoid(i_r + h_r)
        input_gate = jax.nn.sigmoid(i_i + h_i)
        new_gate = jnp.tanh(i_n + reset_gate * h_n)
        hidden = (1 - input_gate) * hidden + input_gate * new_gate

    D = params['emb'].shape[1]
    idx = jnp.broadcast_to(jnp.asarray(alias_inputs)[:, :, None], (B, L, D))
    seq_hidden = jnp.take_along_axis(hidden, idx, axis=1)
    last = jnp.asarray(item_seq_len) - 1
    ht = seq_hidden[jnp.arange(B), last]
    q1 = (ht @ params['w1_t'] + params['b1'])[:, None, :]
    q2 = seq_hidden @ params['w2_t'] + params['b2']
    alpha = jax.nn.sigmoid(q1 + q2) @ params['w3_t']
    mask_f = jnp.asarray(mask, dtype=jnp.float32)[:, :, None]
    a = jnp.sum(alpha * seq_hidden * mask_f, axis=1)
    return jnp.concatenate([a, ht], axis=1) @ params['wt_t'] + params['bt']


# ----------------------------------------------------------------------------
# Deterministic parameter init (uniform(-1/sqrt(D), 1/sqrt(D)), like PyTorch)
# ----------------------------------------------------------------------------
def init_params(key, D, node_count):
    stdv = 1.0 / math.sqrt(D)
    names_shapes = [
        ('emb', (node_count, D)),
        ('w_ih', (3 * D, 2 * D)), ('w_hh', (3 * D, D)),
        ('b_ih', (3 * D,)), ('b_hh', (3 * D,)),
        ('b_iah', (D,)), ('b_ioh', (D,)),
        ('w_ei', (D, D)), ('b_ei', (D,)),
        ('w_eo', (D, D)), ('b_eo', (D,)),
        ('w1', (D, D)), ('b1', (D,)),
        ('w2', (D, D)), ('b2', (D,)),
        ('w3', (1, D)),
        ('wt', (D, 2 * D)), ('bt', (D,)),
    ]
    keys = jax.random.split(key, len(names_shapes))
    raw = {n: jax.random.uniform(k, s, jnp.float32, -stdv, stdv)
           for (n, s), k in zip(names_shapes, keys)}

    p = {'emb': raw['emb']}
    # reference layout: pre-transposed to (in, out); biases to (1, out)
    p['w_ei_t'] = raw['w_ei'].T
    p['b_ei'] = raw['b_ei'].reshape(1, -1)
    p['w_eo_t'] = raw['w_eo'].T
    p['b_eo'] = raw['b_eo'].reshape(1, -1)
    p['b_iah'] = raw['b_iah'].reshape(1, -1)
    p['b_ioh'] = raw['b_ioh'].reshape(1, -1)
    p['w_ih_t'] = raw['w_ih'].T          # (2D, 3D)
    p['b_ih'] = raw['b_ih'].reshape(1, -1)
    p['w_hh_t'] = raw['w_hh'].T          # (D, 3D)
    p['b_hh'] = raw['b_hh'].reshape(1, -1)
    p['w1_t'] = raw['w1'].T
    p['b1'] = raw['b1'].reshape(1, -1)
    p['w2_t'] = raw['w2'].T
    p['b2'] = raw['b2'].reshape(1, -1)
    p['w3_t'] = raw['w3'].T              # (D, 1)
    p['wt_t'] = raw['wt'].T              # (2D, D)
    p['bt'] = raw['bt'].reshape(1, -1)

    # kernel layout: fuse matmuls that share an LHS along the output (lane) axis
    p['w_big'] = jnp.concatenate([p['w_ei_t'], p['w_eo_t'], p['w_hh_t']], axis=1)   # (D, 5D)
    p['b_big'] = jnp.concatenate([p['b_ei'], p['b_eo'], p['b_hh']], axis=1)         # (1, 5D)
    p['w_gi_in'] = p['w_ih_t'][:D]        # (D, 3D) : gates r|i|n for input_in
    p['w_gi_out'] = p['w_ih_t'][D:]       # (D, 3D) : gates r|i|n for input_out
    p['b_gi'] = p['b_ih']                 # (1, 3D)
    p['w3_row'] = raw['w3']               # (1, D), used as VPU mul + lane reduce
    p['wt_a'] = p['wt_t'][:D]             # (D, D)
    p['w_ht'] = jnp.concatenate([p['w1_t'], p['wt_t'][D:]], axis=1)                 # (D, 2D)
    return p


if __name__ == "__main__":
    node_count = 16
    D = 32
    key = jax.random.PRNGKey(0)
    k_param, k_d1, k_d2 = jax.random.split(key, 3)
    params = init_params(k_param, D, node_count)

    def make_data(k, B, L):
        k_seq, k_len = jax.random.split(k)
        lens = np.array(jax.random.randint(k_len, (B,), 2, L + 1))
        seqs = np.array(jax.random.randint(k_seq, (B, L), 1, node_count))
        for b in range(B):
            seqs[b, lens[b]:] = 0
        return seqs.astype(np.int32), lens.astype(np.int32)

    # case 1: tiny batch (B=2, L=8, D=32), step=1, f32 MXU path
    item_seq, item_seq_len = make_data(k_d1, 2, 8)
    out = jax.block_until_ready(srgnn_forward(params, item_seq, item_seq_len, node_count, step=1))
    ref = srgnn_forward_ref(params, item_seq, item_seq_len, node_count, step=1)
    np.testing.assert_allclose(np.asarray(out), np.asarray(ref), rtol=1e-4, atol=1e-5)

    # case 2: exercises L padding (6 -> 8), batch tiling + padding (B=20 -> TB=8, grid=3), step=2
    item_seq2, item_seq_len2 = make_data(k_d2, 20, 6)
    out2 = jax.block_until_ready(srgnn_forward(params, item_seq2, item_seq_len2, node_count, step=2))
    ref2 = srgnn_forward_ref(params, item_seq2, item_seq_len2, node_count, step=2)
    np.testing.assert_allclose(np.asarray(out2), np.asarray(ref2), rtol=2e-4, atol=2e-5)

    # case 3: bf16 MXU operands (v6e/v7x fast path), f32 accumulation; tolerance loosened deliberately
    out3 = jax.block_until_ready(srgnn_forward(params, item_seq, item_seq_len, node_count,
                                               step=1, matmul_dtype=jnp.bfloat16))
    np.testing.assert_allclose(np.asarray(out3), np.asarray(ref), rtol=5e-2, atol=5e-2)

    # TODO(synk): _get_slice graph construction is inherently data-dependent host preprocessing
    # (np.unique / python loops) and is kept outside the kernel.
    print("KERNEL_OK")
</pallas_src>

<mosaic_0001>
module attributes {stable_mosaic.version = 11 : i64} {
  func.func @srgnn_fused_kernel(%arg0: i32, %arg1: memref<2x8x8xf32, #tpu.memory_space<vmem>>, %arg2: memref<2x8x8xf32, #tpu.memory_space<vmem>>, %arg3: memref<2x8x32xf32, #tpu.memory_space<vmem>>, %arg4: memref<2x8xi32, #tpu.memory_space<vmem>>, %arg5: memref<2x8xf32, #tpu.memory_space<vmem>>, %arg6: memref<2x8xf32, #tpu.memory_space<vmem>>, %arg7: memref<32x160xf32, #tpu.memory_space<vmem>>, %arg8: memref<1x160xf32, #tpu.memory_space<vmem>>, %arg9: memref<1x32xf32, #tpu.memory_space<vmem>>, %arg10: memref<1x32xf32, #tpu.memory_space<vmem>>, %arg11: memref<32x96xf32, #tpu.memory_space<vmem>>, %arg12: memref<32x96xf32, #tpu.memory_space<vmem>>, %arg13: memref<1x96xf32, #tpu.memory_space<vmem>>, %arg14: memref<32x32xf32, #tpu.memory_space<vmem>>, %arg15: memref<1x32xf32, #tpu.memory_space<vmem>>, %arg16: memref<1x32xf32, #tpu.memory_space<vmem>>, %arg17: memref<1x32xf32, #tpu.memory_space<vmem>>, %arg18: memref<32x64xf32, #tpu.memory_space<vmem>>, %arg19: memref<32x32xf32, #tpu.memory_space<vmem>>, %arg20: memref<1x32xf32, #tpu.memory_space<vmem>>, %arg21: memref<2x32xf32, #tpu.memory_space<vmem>>) attributes {dimension_semantics = [#tpu.dimension_semantics<parallel>], iteration_bounds = array<i64: 1>, scalar_prefetch = 0 : i64, scratch_operands = 0 : i64, tpu.core_type = #tpu.core_type<tc>, window_params = [{transform_indices = @transform_0, window_bounds = array<i64: 2, 8, 8>}, {transform_indices = @transform_1, window_bounds = array<i64: 2, 8, 8>}, {transform_indices = @transform_2, window_bounds = array<i64: 2, 8, 32>}, {transform_indices = @transform_3, window_bounds = array<i64: 2, 8>}, {transform_indices = @transform_4, window_bounds = array<i64: 2, 8>}, {transform_indices = @transform_5, window_bounds = array<i64: 2, 8>}, {pipeline_mode = #tpu.pipeline_mode<synchronous>, transform_indices = @transform_6, window_bounds = array<i64: 32, 160>}, {pipeline_mode = #tpu.pipeline_mode<synchronous>, transform_indices = @transform_7, window_bounds = array<i64: 1, 160>}, {pipeline_mode = #tpu.pipeline_mode<synchronous>, transform_indices = @transform_8, window_bounds = array<i64: 1, 32>}, {pipeline_mode = #tpu.pipeline_mode<synchronous>, transform_indices = @transform_9, window_bounds = array<i64: 1, 32>}, {pipeline_mode = #tpu.pipeline_mode<synchronous>, transform_indices = @transform_10, window_bounds = array<i64: 32, 96>}, {pipeline_mode = #tpu.pipeline_mode<synchronous>, transform_indices = @transform_11, window_bounds = array<i64: 32, 96>}, {pipeline_mode = #tpu.pipeline_mode<synchronous>, transform_indices = @transform_12, window_bounds = array<i64: 1, 96>}, {pipeline_mode = #tpu.pipeline_mode<synchronous>, transform_indices = @transform_13, window_bounds = array<i64: 32, 32>}, {pipeline_mode = #tpu.pipeline_mode<synchronous>, transform_indices = @transform_14, window_bounds = array<i64: 1, 32>}, {pipeline_mode = #tpu.pipeline_mode<synchronous>, transform_indices = @transform_15, window_bounds = array<i64: 1, 32>}, {pipeline_mode = #tpu.pipeline_mode<synchronous>, transform_indices = @transform_16, window_bounds = array<i64: 1, 32>}, {pipeline_mode = #tpu.pipeline_mode<synchronous>, transform_indices = @transform_17, window_bounds = array<i64: 32, 64>}, {pipeline_mode = #tpu.pipeline_mode<synchronous>, transform_indices = @transform_18, window_bounds = array<i64: 32, 32>}, {pipeline_mode = #tpu.pipeline_mode<synchronous>, transform_indices = @transform_19, window_bounds = array<i64: 1, 32>}, {transform_indices = @transform_20, window_bounds = array<i64: 2, 32>}]} {
    %c0 = arith.constant 0 : index
    %c0_0 = arith.constant 0 : index
    %c0_1 = arith.constant 0 : index
    %0 = vector.load %arg1[%c0, %c0_0, %c0_1] : memref<2x8x8xf32, #tpu.memory_space<vmem>>, vector<2x8x8xf32>
    %c0_2 = arith.constant 0 : index
    %c0_3 = arith.constant 0 : index
    %c0_4 = arith.constant 0 : index
    %1 = vector.load %arg2[%c0_2, %c0_3, %c0_4] : memref<2x8x8xf32, #tpu.memory_space<vmem>>, vector<2x8x8xf32>
    %c0_5 = arith.constant 0 : index
    %c0_6 = arith.constant 0 : index
    %2 = vector.load %arg7[%c0_5, %c0_6] : memref<32x160xf32, #tpu.memory_space<vmem>>, vector<32x160xf32>
    %c0_7 = arith.constant 0 : index
    %c0_8 = arith.constant 0 : index
    %3 = vector.load %arg8[%c0_7, %c0_8] : memref<1x160xf32, #tpu.memory_space<vmem>>, vector<1x160xf32>
    %c0_9 = arith.constant 0 : index
    %c0_10 = arith.constant 0 : index
    %4 = vector.load %arg9[%c0_9, %c0_10] : memref<1x32xf32, #tpu.memory_space<vmem>>, vector<1x32xf32>
    %c0_11 = arith.constant 0 : index
    %c0_12 = arith.constant 0 : index
    %5 = vector.load %arg10[%c0_11, %c0_12] : memref<1x32xf32, #tpu.memory_space<vmem>>, vector<1x32xf32>
    %c0_13 = arith.constant 0 : index
    %c0_14 = arith.constant 0 : index
    %6 = vector.load %arg11[%c0_13, %c0_14] : memref<32x96xf32, #tpu.memory_space<vmem>>, vector<32x96xf32>
    %c0_15 = arith.constant 0 : index
    %c0_16 = arith.constant 0 : index
    %7 = vector.load %arg12[%c0_15, %c0_16] : memref<32x96xf32, #tpu.memory_space<vmem>>, vector<32x96xf32>
    %c0_17 = arith.constant 0 : index
    %c0_18 = arith.constant 0 : index
    %8 = vector.load %arg13[%c0_17, %c0_18] : memref<1x96xf32, #tpu.memory_space<vmem>>, vector<1x96xf32>
    %c0_19 = arith.constant 0 : index
    %c0_20 = arith.constant 0 : index
    %c0_21 = arith.constant 0 : index
    %9 = vector.load %arg3[%c0_19, %c0_20, %c0_21] : memref<2x8x32xf32, #tpu.memory_space<vmem>>, vector<2x8x32xf32>
    %10 = vector.shape_cast %9 : vector<2x8x32xf32> to vector<16x32xf32>
    %cst = arith.constant dense<0.000000e+00> : vector<16x160xf32>
    %11 = tpu.matmul %10, %2, %cst {dimension_numbers = #tpu.dot_dimension_numbers<[1], [0], [0], [1], [0, 0, 1, 1], [], []>} : vector<16x32xf32>, vector<32x160xf32>, vector<16x160xf32> -> vector<16x160xf32>
    %12 = vector.broadcast %3 : vector<1x160xf32> to vector<16x160xf32>
    %13 = arith.addf %11, %12 : vector<16x160xf32>
    %14 = vector.extract_strided_slice %13 {offsets = [0, 0], sizes = [16, 32], strides = [1, 1]} : vector<16x160xf32> to vector<16x32xf32>
    %15 = vector.shape_cast %14 : vector<16x32xf32> to vector<2x8x32xf32>
    %16 = vector.extract_strided_slice %13 {offsets = [0, 32], sizes = [16, 32], strides = [1, 1]} : vector<16x160xf32> to vector<16x32xf32>
    %17 = vector.shape_cast %16 : vector<16x32xf32> to vector<2x8x32xf32>
    %18 = vector.extract_strided_slice %13 {offsets = [0, 64], sizes = [16, 96], strides = [1, 1]} : vector<16x160xf32> to vector<16x96xf32>
    "tpu.trace_start"() <{level = 10 : i32, message = "blm,bmd->bld"}> : () -> ()
    %cst_22 = arith.constant dense<0.000000e+00> : vector<2x8x32xf32>
    %19 = tpu.matmul %0, %15, %cst_22 {dimension_numbers = #tpu.dot_dimension_numbers<[2], [1], [1], [2], [0, 0, 0, 1, 1, 2], [0], [0]>} : vector<2x8x8xf32>, vector<2x8x32xf32>, vector<2x8x32xf32> -> vector<2x8x32xf32>
    "tpu.trace_stop"() : () -> ()
    %20 = vector.shape_cast %4 : vector<1x32xf32> to vector<1x1x32xf32>
    %21 = vector.broadcast %20 : vector<1x1x32xf32> to vector<2x8x32xf32>
    %22 = arith.addf %19, %21 : vector<2x8x32xf32>
    %23 = vector.shape_cast %22 : vector<2x8x32xf32> to vector<16x32xf32>
    "tpu.trace_start"() <{level = 10 : i32, message = "blm,bmd->bld"}> : () -> ()
    %cst_23 = arith.constant dense<0.000000e+00> : vector<2x8x32xf32>
    %24 = tpu.matmul %1, %17, %cst_23 {dimension_numbers = #tpu.dot_dimension_numbers<[2], [1], [1], [2], [0, 0, 0, 1, 1, 2], [0], [0]>} : vector<2x8x8xf32>, vector<2x8x32xf32>, vector<2x8x32xf32> -> vector<2x8x32xf32>
    "tpu.trace_stop"() : () -> ()
    %25 = vector.shape_cast %5 : vector<1x32xf32> to vector<1x1x32xf32>
    %26 = vector.broadcast %25 : vector<1x1x32xf32> to vector<2x8x32xf32>
    %27 = arith.addf %24, %26 : vector<2x8x32xf32>
    %28 = vector.shape_cast %27 : vector<2x8x32xf32> to vector<16x32xf32>
    %cst_24 = arith.constant dense<0.000000e+00> : vector<16x96xf32>
    %29 = tpu.matmul %23, %6, %cst_24 {dimension_numbers = #tpu.dot_dimension_numbers<[1], [0], [0], [1], [0, 0, 1, 1], [], []>} : vector<16x32xf32>, vector<32x96xf32>, vector<16x96xf32> -> vector<16x96xf32>
    %cst_25 = arith.constant dense<0.000000e+00> : vector<16x96xf32>
    %30 = tpu.matmul %28, %7, %cst_25 {dimension_numbers = #tpu.dot_dimension_numbers<[1], [0], [0], [1], [0, 0, 1, 1], [], []>} : vector<16x32xf32>, vector<32x96xf32>, vector<16x96xf32> -> vector<16x96xf32>
    %31 = arith.addf %29, %30 : vector<16x96xf32>
    %32 = vector.broadcast %8 : vector<1x96xf32> to vector<16x96xf32>
    %33 = arith.addf %31, %32 : vector<16x96xf32>
    %34 = vector.extract_strided_slice %33 {offsets = [0, 0], sizes = [16, 64], strides = [1, 1]} : vector<16x96xf32> to vector<16x64xf32>
    %35 = vector.extract_strided_slice %18 {offsets = [0, 0], sizes = [16, 64], strides = [1, 1]} : vector<16x96xf32> to vector<16x64xf32>
    %36 = arith.addf %34, %35 : vector<16x64xf32>
    %37 = arith.negf %36 : vector<16x64xf32>
    %38 = math.exp %37 : vector<16x64xf32>
    %cst_26 = arith.constant 1.000000e+00 : f32
    %39 = vector.broadcast %cst_26 : f32 to vector<16x64xf32>
    %40 = arith.addf %39, %38 : vector<16x64xf32>
    %41 = arith.divf %39, %40 : vector<16x64xf32>
    %42 = vector.extract_strided_slice %41 {offsets = [0, 0], sizes = [16, 32], strides = [1, 1]} : vector<16x64xf32> to vector<16x32xf32>
    %43 = vector.extract_strided_slice %41 {offsets = [0, 32], sizes = [16, 32], strides = [1, 1]} : vector<16x64xf32> to vector<16x32xf32>
    %44 = vector.extract_strided_slice %33 {offsets = [0, 64], sizes = [16, 32], strides = [1, 1]} : vector<16x96xf32> to vector<16x32xf32>
    %45 = vector.extract_strided_slice %18 {offsets = [0, 64], sizes = [16, 32], strides = [1, 1]} : vector<16x96xf32> to vector<16x32xf32>
    %46 = arith.mulf %42, %45 : vector<16x32xf32>
    %47 = arith.addf %44, %46 : vector<16x32xf32>
    %48 = math.tanh %47 : vector<16x32xf32>
    %cst_27 = arith.constant 1.000000e+00 : f32
    %49 = vector.broadcast %cst_27 : f32 to vector<16x32xf32>
    %50 = arith.subf %49, %43 : vector<16x32xf32>
    %51 = arith.mulf %50, %10 : vector<16x32xf32>
    %52 = arith.mulf %43, %48 : vector<16x32xf32>
    %53 = arith.addf %51, %52 : vector<16x32xf32>
    %54 = vector.shape_cast %53 : vector<16x32xf32> to vector<2x8x32xf32>
    %c0_28 = arith.constant 0 : index
    %c0_29 = arith.constant 0 : index
    %55 = vector.load %arg4[%c0_28, %c0_29] : memref<2x8xi32, #tpu.memory_space<vmem>>, vector<2x8xi32>
    %56 = tpu.iota {dimensions = array<i32: 2>} : vector<2x8x8xi32>
    %57 = vector.shape_cast %55 : vector<2x8xi32> to vector<2x8x1xi32>
    %58 = vector.broadcast %57 : vector<2x8x1xi32> to vector<2x8x8xi32>
    %59 = arith.cmpi eq, %56, %58 : vector<2x8x8xi32>
    %60 = arith.extui %59 : vector<2x8x8xi1> to vector<2x8x8xi32>
    %61 = arith.sitofp %60 : vector<2x8x8xi32> to vector<2x8x8xf32>
    "tpu.trace_start"() <{level = 10 : i32, message = "btl,bld->btd"}> : () -> ()
    %cst_30 = arith.constant dense<0.000000e+00> : vector<2x8x32xf32>
    %62 = tpu.matmul %61, %54, %cst_30 {dimension_numbers = #tpu.dot_dimension_numbers<[2], [1], [1], [2], [0, 0, 0, 1, 1, 2], [0], [0]>} : vector<2x8x8xf32>, vector<2x8x32xf32>, vector<2x8x32xf32> -> vector<2x8x32xf32>
    "tpu.trace_stop"() : () -> ()
    %c0_31 = arith.constant 0 : index
    %c0_32 = arith.constant 0 : index
    %63 = vector.load %arg5[%c0_31, %c0_32] : memref<2x8xf32, #tpu.memory_space<vmem>>, vector<2x8xf32>
    %64 = vector.shape_cast %63 : vector<2x8xf32> to vector<2x8x1xf32>
    %65 = vector.broadcast %64 : vector<2x8x1xf32> to vector<2x8x32xf32>
    %66 = arith.mulf %65, %62 : vector<2x8x32xf32>
    %cst_33 = arith.constant dense<0.000000e+00> : vector<2x32xf32>
    %67 = vector.multi_reduction <add>, %66, %cst_33 [1] : vector<2x8x32xf32> to vector<2x32xf32>
    %c0_34 = arith.constant 0 : index
    %c0_35 = arith.constant 0 : index
    %68 = vector.load %arg18[%c0_34, %c0_35] : memref<32x64xf32, #tpu.memory_space<vmem>>, vector<32x64xf32>
    %cst_36 = arith.constant dense<0.000000e+00> : vector<2x64xf32>
    %69 = tpu.matmul %67, %68, %cst_36 {dimension_numbers = #tpu.dot_dimension_numbers<[1], [0], [0], [1], [0, 0, 1, 1], [], []>} : vector<2x32xf32>, vector<32x64xf32>, vector<2x64xf32> -> vector<2x64xf32>
    %70 = vector.extract_strided_slice %69 {offsets = [0, 0], sizes = [2, 32], strides = [1, 1]} : vector<2x64xf32> to vector<2x32xf32>
    %c0_37 = arith.constant 0 : index
    %c0_38 = arith.constant 0 : index
    %71 = vector.load %arg16[%c0_37, %c0_38] : memref<1x32xf32, #tpu.memory_space<vmem>>, vector<1x32xf32>
    %72 = vector.broadcast %71 : vector<1x32xf32> to vector<2x32xf32>
    %73 = arith.addf %70, %72 : vector<2x32xf32>
    %74 = vector.extract_strided_slice %69 {offsets = [0, 32], sizes = [2, 32], strides = [1, 1]} : vector<2x64xf32> to vector<2x32xf32>
    %75 = vector.shape_cast %62 : vector<2x8x32xf32> to vector<16x32xf32>
    %c0_39 = arith.constant 0 : index
    %c0_40 = arith.constant 0 : index
    %76 = vector.load %arg14[%c0_39, %c0_40] : memref<32x32xf32, #tpu.memory_space<vmem>>, vector<32x32xf32>
    %cst_41 = arith.constant dense<0.000000e+00> : vector<16x32xf32>
    %77 = tpu.matmul %75, %76, %cst_41 {dimension_numbers = #tpu.dot_dimension_numbers<[1], [0], [0], [1], [0, 0, 1, 1], [], []>} : vector<16x32xf32>, vector<32x32xf32>, vector<16x32xf32> -> vector<16x32xf32>
    %c0_42 = arith.constant 0 : index
    %c0_43 = arith.constant 0 : index
    %78 = vector.load %arg15[%c0_42, %c0_43] : memref<1x32xf32, #tpu.memory_space<vmem>>, vector<1x32xf32>
    %79 = vector.broadcast %78 : vector<1x32xf32> to vector<16x32xf32>
    %80 = arith.addf %77, %79 : vector<16x32xf32>
    %81 = vector.shape_cast %80 : vector<16x32xf32> to vector<2x8x32xf32>
    %82 = vector.shape_cast %73 : vector<2x32xf32> to vector<2x1x32xf32>
    %83 = vector.broadcast %82 : vector<2x1x32xf32> to vector<2x8x32xf32>
    %84 = arith.addf %83, %81 : vector<2x8x32xf32>
    %85 = arith.negf %84 : vector<2x8x32xf32>
    %86 = math.exp %85 : vector<2x8x32xf32>
    %cst_44 = arith.constant 1.000000e+00 : f32
    %87 = vector.broadcast %cst_44 : f32 to vector<2x8x32xf32>
    %88 = arith.addf %87, %86 : vector<2x8x32xf32>
    %89 = arith.divf %87, %88 : vector<2x8x32xf32>
    %c0_45 = arith.constant 0 : index
    %c0_46 = arith.constant 0 : index
    %90 = vector.load %arg17[%c0_45, %c0_46] : memref<1x32xf32, #tpu.memory_space<vmem>>, vector<1x32xf32>
    %91 = vector.shape_cast %90 : vector<1x32xf32> to vector<32xf32>
    %92 = vector.shape_cast %91 : vector<32xf32> to vector<1x1x32xf32>
    %93 = vector.broadcast %92 : vector<1x1x32xf32> to vector<2x8x32xf32>
    %94 = arith.mulf %89, %93 : vector<2x8x32xf32>
    %cst_47 = arith.constant dense<0.000000e+00> : vector<2x8xf32>
    %95 = vector.multi_reduction <add>, %94, %cst_47 [2] : vector<2x8x32xf32> to vector<2x8xf32>
    %96 = vector.shape_cast %95 : vector<2x8xf32> to vector<2x8x1xf32>
    %c0_48 = arith.constant 0 : index
    %c0_49 = arith.constant 0 : index
    %97 = vector.load %arg6[%c0_48, %c0_49] : memref<2x8xf32, #tpu.memory_space<vmem>>, vector<2x8xf32>
    %98 = vector.broadcast %96 : vector<2x8x1xf32> to vector<2x8x32xf32>
    %99 = arith.mulf %98, %62 : vector<2x8x32xf32>
    %100 = vector.shape_cast %97 : vector<2x8xf32> to vector<2x8x1xf32>
    %101 = vector.broadcast %100 : vector<2x8x1xf32> to vector<2x8x32xf32>
    %102 = arith.mulf %99, %101 : vector<2x8x32xf32>
    %cst_50 = arith.constant dense<0.000000e+00> : vector<2x32xf32>
    %103 = vector.multi_reduction <add>, %102, %cst_50 [1] : vector<2x8x32xf32> to vector<2x32xf32>
    %c0_51 = arith.constant 0 : index
    %c0_52 = arith.constant 0 : index
    %104 = vector.load %arg19[%c0_51, %c0_52] : memref<32x32xf32, #tpu.memory_space<vmem>>, vector<32x32xf32>
    %cst_53 = arith.constant dense<0.000000e+00> : vector<2x32xf32>
    %105 = tpu.matmul %103, %104, %cst_53 {dimension_numbers = #tpu.dot_dimension_numbers<[1], [0], [0], [1], [0, 0, 1, 1], [], []>} : vector<2x32xf32>, vector<32x32xf32>, vector<2x32xf32> -> vector<2x32xf32>
    %106 = arith.addf %105, %74 : vector<2x32xf32>
    %c0_54 = arith.constant 0 : index
    %c0_55 = arith.constant 0 : index
    %107 = vector.load %arg20[%c0_54, %c0_55] : memref<1x32xf32, #tpu.memory_space<vmem>>, vector<1x32xf32>
    %108 = vector.broadcast %107 : vector<1x32xf32> to vector<2x32xf32>
    %109 = arith.addf %106, %108 : vector<2x32xf32>
    %c0_56 = arith.constant 0 : index
    %c0_57 = arith.constant 0 : index
    %110 = vector.load %arg21[%c0_56, %c0_57] : memref<2x32xf32, #tpu.memory_space<vmem>>, vector<2x32xf32>
    tpu.vector_store %arg21[%c0_56, %c0_57], %109 {strides = array<i32>} : memref<2x32xf32, #tpu.memory_space<vmem>>, vector<2x32xf32>,
    return
  }
  func.func @transform_0(%arg0: i32) -> (i32, i32, i32) {
    %c0_i32 = arith.constant 0 : i32
    %c0_i32_0 = arith.constant 0 : i32
    %c0_i32_1 = arith.constant 0 : i32
    return %arg0, %c0_i32, %c0_i32_0 : i32, i32, i32
  }
  func.func @transform_1(%arg0: i32) -> (i32, i32, i32) {
    %c0_i32 = arith.constant 0 : i32
    %c0_i32_0 = arith.constant 0 : i32
    %c0_i32_1 = arith.constant 0 : i32
    return %arg0, %c0_i32, %c0_i32_0 : i32, i32, i32
  }
  func.func @transform_2(%arg0: i32) -> (i32, i32, i32) {
    %c0_i32 = arith.constant 0 : i32
    %c0_i32_0 = arith.constant 0 : i32
    %c0_i32_1 = arith.constant 0 : i32
    return %arg0, %c0_i32, %c0_i32_0 : i32, i32, i32
  }
  func.func @transform_3(%arg0: i32) -> (i32, i32) {
    %c0_i32 = arith.constant 0 : i32
    %c0_i32_0 = arith.constant 0 : i32
    return %arg0, %c0_i32 : i32, i32
  }
  func.func @transform_4(%arg0: i32) -> (i32, i32) {
    %c0_i32 = arith.constant 0 : i32
    %c0_i32_0 = arith.constant 0 : i32
    return %arg0, %c0_i32 : i32, i32
  }
  func.func @transform_5(%arg0: i32) -> (i32, i32) {
    %c0_i32 = arith.constant 0 : i32
    %c0_i32_0 = arith.constant 0 : i32
    return %arg0, %c0_i32 : i32, i32
  }
  func.func @transform_6(%arg0: i32) -> (i32, i32) {
    %c0_i32 = arith.constant 0 : i32
    %c0_i32_0 = arith.constant 0 : i32
    %c0_i32_1 = arith.constant 0 : i32
    return %c0_i32, %c0_i32_0 : i32, i32
  }
  func.func @transform_7(%arg0: i32) -> (i32, i32) {
    %c0_i32 = arith.constant 0 : i32
    %c0_i32_0 = arith.constant 0 : i32
    %c0_i32_1 = arith.constant 0 : i32
    return %c0_i32, %c0_i32_0 : i32, i32
  }
  func.func @transform_8(%arg0: i32) -> (i32, i32) {
    %c0_i32 = arith.constant 0 : i32
    %c0_i32_0 = arith.constant 0 : i32
    %c0_i32_1 = arith.constant 0 : i32
    return %c0_i32, %c0_i32_0 : i32, i32
  }
  func.func @transform_9(%arg0: i32) -> (i32, i32) {
    %c0_i32 = arith.constant 0 : i32
    %c0_i32_0 = arith.constant 0 : i32
    %c0_i32_1 = arith.constant 0 : i32
    return %c0_i32, %c0_i32_0 : i32, i32
  }
  func.func @transform_10(%arg0: i32) -> (i32, i32) {
    %c0_i32 = arith.constant 0 : i32
    %c0_i32_0 = arith.constant 0 : i32
    %c0_i32_1 = arith.constant 0 : i32
    return %c0_i32, %c0_i32_0 : i32, i32
  }
  func.func @transform_11(%arg0: i32) -> (i32, i32) {
    %c0_i32 = arith.constant 0 : i32
    %c0_i32_0 = arith.constant 0 : i32
    %c0_i32_1 = arith.constant 0 : i32
    return %c0_i32, %c0_i32_0 : i32, i32
  }
  func.func @transform_12(%arg0: i32) -> (i32, i32) {
    %c0_i32 = arith.constant 0 : i32
    %c0_i32_0 = arith.constant 0 : i32
    %c0_i32_1 = arith.constant 0 : i32
    return %c0_i32, %c0_i32_0 : i32, i32
  }
  func.func @transform_13(%arg0: i32) -> (i32, i32) {
    %c0_i32 = arith.constant 0 : i32
    %c0_i32_0 = arith.constant 0 : i32
    %c0_i32_1 = arith.constant 0 : i32
    return %c0_i32, %c0_i32_0 : i32, i32
  }
  func.func @transform_14(%arg0: i32) -> (i32, i32) {
    %c0_i32 = arith.constant 0 : i32
    %c0_i32_0 = arith.constant 0 : i32
    %c0_i32_1 = arith.constant 0 : i32
    return %c0_i32, %c0_i32_0 : i32, i32
  }
  func.func @transform_15(%arg0: i32) -> (i32, i32) {
    %c0_i32 = arith.constant 0 : i32
    %c0_i32_0 = arith.constant 0 : i32
    %c0_i32_1 = arith.constant 0 : i32
    return %c0_i32, %c0_i32_0 : i32, i32
  }
  func.func @transform_16(%arg0: i32) -> (i32, i32) {
    %c0_i32 = arith.constant 0 : i32
    %c0_i32_0 = arith.constant 0 : i32
    %c0_i32_1 = arith.constant 0 : i32
    return %c0_i32, %c0_i32_0 : i32, i32
  }
  func.func @transform_17(%arg0: i32) -> (i32, i32) {
    %c0_i32 = arith.constant 0 : i32
    %c0_i32_0 = arith.constant 0 : i32
    %c0_i32_1 = arith.constant 0 : i32
    return %c0_i32, %c0_i32_0 : i32, i32
  }
  func.func @transform_18(%arg0: i32) -> (i32, i32) {
    %c0_i32 = arith.constant 0 : i32
    %c0_i32_0 = arith.constant 0 : i32
    %c0_i32_1 = arith.constant 0 : i32
    return %c0_i32, %c0_i32_0 : i32, i32
  }
  func.func @transform_19(%arg0: i32) -> (i32, i32) {
    %c0_i32 = arith.constant 0 : i32
    %c0_i32_0 = arith.constant 0 : i32
    %c0_i32_1 = arith.constant 0 : i32
    return %c0_i32, %c0_i32_0 : i32, i32
  }
  func.func @transform_20(%arg0: i32) -> (i32, i32) {
    %c0_i32 = arith.constant 0 : i32
    %c0_i32_0 = arith.constant 0 : i32
    return %arg0, %c0_i32 : i32, i32
  }
}

</mosaic_0001>

<llo_original>
// kernel: tpu_custom_call.1
$region0: #{tpu_custom_call.1}
  #allocation0 [shape = 'u32[]', space=smem, size = 0x4, offset = 0x4, fixed_abs, tag = 'smem constant byte address 0x4 - core index']
  #allocation1 [shape = 'u32[144,128]{1,0:T(1,128)}', space=vmem, size = 0x12000, scoped, tag = 'internal scratch']
  %s0 = inlined_call_operand.hbm [shape: f32[2,8,8], index: 0, kind: input, shape index: {}]
  %s1 = inlined_call_operand.hbm [shape: f32[2,8,8], index: 1, kind: input, shape index: {}]
  %s2 = inlined_call_operand.hbm [shape: f32[2,8,32], index: 2, kind: input, shape index: {}]
  %s3 = inlined_call_operand.hbm [shape: s32[2,8], index: 3, kind: input, shape index: {}]
  %s4 = inlined_call_operand.hbm [shape: f32[2,8], index: 4, kind: input, shape index: {}]
  %s5 = inlined_call_operand.hbm [shape: f32[2,8], index: 5, kind: input, shape index: {}]
  %s6 = inlined_call_operand.hbm [shape: f32[32,160], index: 6, kind: input, shape index: {}]
  %s7 = inlined_call_operand.hbm [shape: f32[1,160], index: 7, kind: input, shape index: {}]
  %s8 = inlined_call_operand.hbm [shape: f32[1,32], index: 8, kind: input, shape index: {}]
  %s9 = inlined_call_operand.hbm [shape: f32[1,32], index: 9, kind: input, shape index: {}]
  %s10 = inlined_call_operand.vmem [shape: f32[32,96], index: 10, kind: input, shape index: {}]
  %s11 = inlined_call_operand.hbm [shape: f32[32,96], index: 11, kind: input, shape index: {}]
  %s12 = inlined_call_operand.hbm [shape: f32[1,96], index: 12, kind: input, shape index: {}]
  %s13 = inlined_call_operand.hbm [shape: f32[32,32], index: 13, kind: input, shape index: {}]
  %s14 = inlined_call_operand.hbm [shape: f32[1,32], index: 14, kind: input, shape index: {}]
  %s15 = inlined_call_operand.hbm [shape: f32[1,32], index: 15, kind: input, shape index: {}]
  %s16 = inlined_call_operand.hbm [shape: f32[1,32], index: 16, kind: input, shape index: {}]
  %s17 = inlined_call_operand.vmem [shape: f32[32,64], index: 17, kind: input, shape index: {}]
  %s18 = inlined_call_operand.hbm [shape: f32[32,32], index: 18, kind: input, shape index: {}]
  %s19 = inlined_call_operand.vmem [shape: f32[1,32], index: 19, kind: input, shape index: {}]
  %s20 = inlined_call_operand.hbm [shape: f32[2,32], index: 20, kind: output, shape index: {}]
  %s21 = sld [smem:[#allocation0]]
  $region158: #{tpu_custom_call.1} parent=0
    _
  %s23 = ssub.s32 1, %s21
  %s24 = scalar_select 0, %s23, %s21
  $region1: #{tpu_custom_call.1} parent=0
    #allocation2 [shape = 'u8[8192]{0}', space=vmem, size = 0x2000, scoped, tag = 'input window, operand 0, single buffered']
    #allocation3 [shape = 's32[1]{0}', space=sflag, size = 0x4, scoped, tag = 'scoped memory for tpu_custom_call.1']
    #allocation4 [shape = 's32[1]{0}', space=sflag, size = 0x4, scoped, tag = 'scoped memory for tpu_custom_call.1']
    #allocation5 [shape = 'u8[8192]{0}', space=vmem, size = 0x2000, scoped, tag = 'input window, operand 1, single buffered']
    #allocation6 [shape = 's32[1]{0}', space=sflag, size = 0x4, scoped, tag = 'scoped memory for tpu_custom_call.1']
    #allocation7 [shape = 'u8[8192]{0}', space=vmem, size = 0x2000, scoped, tag = 'input window, operand 2, single buffered']
    #allocation8 [shape = 'u8[1024]{0}', space=vmem, size = 0x400, scoped, tag = 'input window, operand 3, single buffered']
    #allocation9 [shape = 's32[1]{0}', space=sflag, size = 0x4, scoped, tag = 'scoped memory for tpu_custom_call.1']
    #allocation10 [shape = 'u8[1024]{0}', space=vmem, size = 0x400, scoped, tag = 'input window, operand 4, single buffered']
    #allocation11 [shape = 'u8[1024]{0}', space=vmem, size = 0x400, scoped, tag = 'input window, operand 5, single buffered']
    #allocation12 [shape = 's32[1]{0}', space=sflag, size = 0x4, scoped, tag = 'scoped memory for tpu_custom_call.1']
    #allocation13 [shape = 'u8[32768]{0}', space=vmem, size = 0x8000, scoped, tag = 'input window, operand 6, single buffered']
    #allocation14 [shape = 'u8[1024]{0}', space=vmem, size = 0x400, scoped, tag = 'input window, operand 7, single buffered']
    #allocation15 [shape = 's32[1]{0}', space=sflag, size = 0x4, scoped, tag = 'scoped memory for tpu_custom_call.1']
    #allocation16 [shape = 'u8[512]{0}', space=vmem, size = 0x400, scoped, tag = 'input window, operand 8, single buffered']
    #allocation17 [shape = 'u8[512]{0}', space=vmem, size = 0x400, scoped, tag = 'input window, operand 9, single buffered']
    #allocation18 [shape = 's32[1]{0}', space=sflag, size = 0x4, scoped, tag = 'scoped memory for tpu_custom_call.1']
    #allocation19 [shape = 'u8[16384]{0}', space=vmem, size = 0x4000, scoped, tag = 'input window, operand 11, single buffered']
    #allocation20 [shape = 'u8[512]{0}', space=vmem, size = 0x400, scoped, tag = 'input window, operand 12, single buffered']
    #allocation21 [shape = 's32[1]{0}', space=sflag, size = 0x4, scoped, tag = 'scoped memory for tpu_custom_call.1']
    #allocation22 [shape = 'u8[16384]{0}', space=vmem, size = 0x4000, scoped, tag = 'input window, operand 13, single buffered']
    #allocation23 [shape = 'u8[512]{0}', space=vmem, size = 0x400, scoped, tag = 'input window, operand 14, single buffered']
    #allocation24 [shape = 's32[1]{0}', space=sflag, size = 0x4, scoped, tag = 'scoped memory for tpu_custom_call.1']
    #allocation25 [shape = 'u8[512]{0}', space=vmem, size = 0x400, scoped, tag = 'input window, operand 15, single buffered']
    #allocation26 [shape = 'u8[512]{0}', space=vmem, size = 0x400, scoped, tag = 'input window, operand 16, single buffered']
    #allocation27 [shape = 's32[1]{0}', space=sflag, size = 0x4, scoped, tag = 'scoped memory for tpu_custom_call.1']
    #allocation28 [shape = 'u8[16384]{0}', space=vmem, size = 0x4000, scoped, tag = 'input window, operand 18, single buffered']
    #allocation29 [shape = 'u8[1024]{0}', space=vmem, size = 0x400, scoped, tag = 'output window, operand 0, single buffered']
    %25 = vsyncpa [#allocation3], 0
    %26 = vsyncpa [#allocation6], 0
    %27 = vsyncpa [#allocation9], 0
    %28 = vsyncpa [#allocation12], 0
    %29 = vsyncpa [#allocation15], 0
    %30 = vsyncpa [#allocation18], 0
    %31 = vsyncpa [#allocation21], 0
    %32 = vsyncpa [#allocation24], 0
    %33 = vsyncpa [#allocation27], 0
    %34 = vsyncpa [#allocation4], 0
    // Predicated region
    $region2: #{tpu_custom_call.1} parent=1 // pred_check
      _
    $region3: #{tpu_custom_call.1} parent=1 // pred_check_branch
      %36 = sbr.rel (0) target = $region5
    $region4: #{tpu_custom_call.1} parent=1 // pred_region
      %s38 = ssub.s32 256, 256
      %39 = vsyncadd [#allocation3], %s38
      %s40 = sshll.u32 [#allocation2], 4
      %s41 = int_to_ptr.vmem [resolvable:$true] %s40
      %46 = dma.hbm_to_vmem [thread:$0]  %s0, 256, %s41, [#allocation3], 128, 128, 8
    $region5: #{tpu_custom_call.1} parent=1 // pred_fallthru
      _
    // Predicated region
    $region6: #{tpu_custom_call.1} parent=1 // pred_check
      _
    $region7: #{tpu_custom_call.1} parent=1 // pred_check_branch
      %48 = sbr.rel (0) target = $region9
    $region8: #{tpu_custom_call.1} parent=1 // pred_region
      %s50 = ssub.s32 256, 256
      %51 = vsyncadd [#allocation6], %s50
      %s52 = sshll.u32 [#allocation5], 4
      %s53 = int_to_ptr.vmem [resolvable:$true] %s52
      %58 = dma.hbm_to_vmem [thread:$0]  %s1, 256, %s53, [#allocation6], 128, 128, 8
    $region9: #{tpu_custom_call.1} parent=1 // pred_fallthru
      _
    // Predicated region
    $region10: #{tpu_custom_call.1} parent=1 // pred_check
      _
    $region11: #{tpu_custom_call.1} parent=1 // pred_check_branch
      %60 = sbr.rel (0) target = $region13
    $region12: #{tpu_custom_call.1} parent=1 // pred_region
      %s62 = ssub.s32 256, 256
      %63 = vsyncadd [#allocation6], %s62
      %s64 = sshll.u32 [#allocation7], 4
      %s65 = int_to_ptr.vmem [resolvable:$true] %s64
      %70 = dma.hbm_to_vmem [thread:$0]  %s2, 256, %s65, [#allocation6], 128, 128, 8
    $region13: #{tpu_custom_call.1} parent=1 // pred_fallthru
      _
    // Predicated region
    $region14: #{tpu_custom_call.1} parent=1 // pred_check
      _
    $region15: #{tpu_custom_call.1} parent=1 // pred_check_branch
      %72 = sbr.rel (0) target = $region17
    $region16: #{tpu_custom_call.1} parent=1 // pred_region
      %s74 = ssub.s32 32, 32
      %75 = vsyncadd [#allocation9], %s74
      %s77 = sshll.u32 [#allocation8], 4
      %s78 = int_to_ptr.vmem [resolvable:$true] %s77
      %80 = dma.hbm_to_vmem [thread:$0]  %s3, 32, %s78, [#allocation9]
    $region17: #{tpu_custom_call.1} parent=1 // pred_fallthru
      _
    // Predicated region
    $region18: #{tpu_custom_call.1} parent=1 // pred_check
      _
    $region19: #{tpu_custom_call.1} parent=1 // pred_check_branch
      %82 = sbr.rel (0) target = $region21
    $region20: #{tpu_custom_call.1} parent=1 // pred_region
      %s84 = ssub.s32 32, 32
      %85 = vsyncadd [#allocation9], %s84
      %s87 = sshll.u32 [#allocation10], 4
      %s88 = int_to_ptr.vmem [resolvable:$true] %s87
      %90 = dma.hbm_to_vmem [thread:$0]  %s4, 32, %s88, [#allocation9]
    $region21: #{tpu_custom_call.1} parent=1 // pred_fallthru
      _
    // Predicated region
    $region22: #{tpu_custom_call.1} parent=1 // pred_check
      _
    $region23: #{tpu_custom_call.1} parent=1 // pred_check_branch
      %92 = sbr.rel (0) target = $region25
    $region24: #{tpu_custom_call.1} parent=1 // pred_region
      %s94 = ssub.s32 32, 32
      %95 = vsyncadd [#allocation12], %s94
      %s97 = sshll.u32 [#allocation11], 4
      %s98 = int_to_ptr.vmem [resolvable:$true] %s97
      %100 = dma.hbm_to_vmem [thread:$0]  %s5, 32, %s98, [#allocation12]
    $region25: #{tpu_custom_call.1} parent=1 // pred_fallthru
      _
    // Predicated region
    $region26: #{tpu_custom_call.1} parent=1 // pred_check
      _
    $region27: #{tpu_custom_call.1} parent=1 // pred_check_branch
      %102 = sbr.rel (0) target = $region29
    $region28: #{tpu_custom_call.1} parent=1 // pred_region
      %s104 = ssub.s32 1024, 1024
      %105 = vsyncadd [#allocation12], %s104
      %s106 = sshll.u32 [#allocation13], 4
      %s107 = int_to_ptr.vmem [resolvable:$true] %s106
      %112 = dma.hbm_to_vmem [thread:$0]  %s6, 1024, %s107, [#allocation12], 256, 256, 16
    $region29: #{tpu_custom_call.1} parent=1 // pred_fallthru
      _
    // Predicated region
    $region30: #{tpu_custom_call.1} parent=1 // pred_check
      _
    $region31: #{tpu_custom_call.1} parent=1 // pred_check_branch
      %114 = sbr.rel (0) target = $region33
    $region32: #{tpu_custom_call.1} parent=1 // pred_region
      %s116 = ssub.s32 32, 32
      %117 = vsyncadd [#allocation15], %s116
      %s119 = sshll.u32 [#allocation14], 4
      %s120 = int_to_ptr.vmem [resolvable:$true] %s119
      %122 = dma.hbm_to_vmem [thread:$0]  %s7, 32, %s120, [#allocation15]
    $region33: #{tpu_custom_call.1} parent=1 // pred_fallthru
      _
    // Predicated region
    $region34: #{tpu_custom_call.1} parent=1 // pred_check
      _
    $region35: #{tpu_custom_call.1} parent=1 // pred_check_branch
      %124 = sbr.rel (0) target = $region37
    $region36: #{tpu_custom_call.1} parent=1 // pred_region
      %s126 = ssub.s32 16, 16
      %127 = vsyncadd [#allocation15], %s126
      %s129 = sshll.u32 [#allocation16], 4
      %s130 = int_to_ptr.vmem [resolvable:$true] %s129
      %132 = dma.hbm_to_vmem [thread:$0]  %s8, 16, %s130, [#allocation15]
    $region37: #{tpu_custom_call.1} parent=1 // pred_fallthru
      _
    // Predicated region
    $region38: #{tpu_custom_call.1} parent=1 // pred_check
      _
    $region39: #{tpu_custom_call.1} parent=1 // pred_check_branch
      %134 = sbr.rel (0) target = $region41
    $region40: #{tpu_custom_call.1} parent=1 // pred_region
      %s136 = ssub.s32 16, 16
      %137 = vsyncadd [#allocation18], %s136
      %s139 = sshll.u32 [#allocation17], 4
      %s140 = int_to_ptr.vmem [resolvable:$true] %s139
      %142 = dma.hbm_to_vmem [thread:$0]  %s9, 16, %s140, [#allocation18]
    $region41: #{tpu_custom_call.1} parent=1 // pred_fallthru
      _
    // Predicated region
    $region42: #{tpu_custom_call.1} parent=1 // pred_check
      _
    $region43: #{tpu_custom_call.1} parent=1 // pred_check_branch
      %144 = sbr.rel (0) target = $region45
    $region44: #{tpu_custom_call.1} parent=1 // pred_region
      _
    $region45: #{tpu_custom_call.1} parent=1 // pred_fallthru
      _
    // Predicated region
    $region46: #{tpu_custom_call.1} parent=1 // pred_check
      _
    $region47: #{tpu_custom_call.1} parent=1 // pred_check_branch
      %146 = sbr.rel (0) target = $region49
    $region48: #{tpu_custom_call.1} parent=1 // pred_region
      %s148 = ssub.s32 512, 512
      %149 = vsyncadd [#allocation18], %s148
      %s150 = sshll.u32 [#allocation19], 4
      %s151 = int_to_ptr.vmem [resolvable:$true] %s150
      %156 = dma.hbm_to_vmem [thread:$0]  %s11, 512, %s151, [#allocation18], 128, 128, 8
    $region49: #{tpu_custom_call.1} parent=1 // pred_fallthru
      _
    // Predicated region
    $region50: #{tpu_custom_call.1} parent=1 // pred_check
      _
    $region51: #{tpu_custom_call.1} parent=1 // pred_check_branch
      %158 = sbr.rel (0) target = $region53
    $region52: #{tpu_custom_call.1} parent=1 // pred_region
      %s160 = ssub.s32 16, 16
      %161 = vsyncadd [#allocation21], %s160
      %s163 = sshll.u32 [#allocation20], 4
      %s164 = int_to_ptr.vmem [resolvable:$true] %s163
      %166 = dma.hbm_to_vmem [thread:$0]  %s12, 16, %s164, [#allocation21]
    $region53: #{tpu_custom_call.1} parent=1 // pred_fallthru
      _
    // Predicated region
    $region54: #{tpu_custom_call.1} parent=1 // pred_check
      _
    $region55: #{tpu_custom_call.1} parent=1 // pred_check_branch
      %168 = sbr.rel (0) target = $region57
    $region56: #{tpu_custom_call.1} parent=1 // pred_region
      %s170 = ssub.s32 512, 512
      %171 = vsyncadd [#allocation21], %s170
      %s172 = sshll.u32 [#allocation22], 4
      %s173 = int_to_ptr.vmem [resolvable:$true] %s172
      %178 = dma.hbm_to_vmem [thread:$0]  %s13, 512, %s173, [#allocation21], 128, 128, 8
    $region57: #{tpu_custom_call.1} parent=1 // pred_fallthru
      _
    // Predicated region
    $region58: #{tpu_custom_call.1} parent=1 // pred_check
      _
    $region59: #{tpu_custom_call.1} parent=1 // pred_check_branch
      %180 = sbr.rel (0) target = $region61
    $region60: #{tpu_custom_call.1} parent=1 // pred_region
      %s182 = ssub.s32 16, 16
      %183 = vsyncadd [#allocation24], %s182
      %s185 = sshll.u32 [#allocation23], 4
      %s186 = int_to_ptr.vmem [resolvable:$true] %s185
      %188 = dma.hbm_to_vmem [thread:$0]  %s14, 16, %s186, [#allocation24]
    $region61: #{tpu_custom_call.1} parent=1 // pred_fallthru
      _
    // Predicated region
    $region62: #{tpu_custom_call.1} parent=1 // pred_check
      _
    $region63: #{tpu_custom_call.1} parent=1 // pred_check_branch
      %190 = sbr.rel (0) target = $region65
    $region64: #{tpu_custom_call.1} parent=1 // pred_region
      %s192 = ssub.s32 16, 16
      %193 = vsyncadd [#allocation24], %s192
      %s195 = sshll.u32 [#allocation25], 4
      %s196 = int_to_ptr.vmem [resolvable:$true] %s195
      %198 = dma.hbm_to_vmem [thread:$0]  %s15, 16, %s196, [#allocation24]
    $region65: #{tpu_custom_call.1} parent=1 // pred_fallthru
      _
    // Predicated region
    $region66: #{tpu_custom_call.1} parent=1 // pred_check
      _
    $region67: #{tpu_custom_call.1} parent=1 // pred_check_branch
      %200 = sbr.rel (0) target = $region69
    $region68: #{tpu_custom_call.1} parent=1 // pred_region
      %s202 = ssub.s32 16, 16
      %203 = vsyncadd [#allocation27], %s202
      %s205 = sshll.u32 [#allocation26], 4
      %s206 = int_to_ptr.vmem [resolvable:$true] %s205
      %208 = dma.hbm_to_vmem [thread:$0]  %s16, 16, %s206, [#allocation27]
    $region69: #{tpu_custom_call.1} parent=1 // pred_fallthru
      _
    // Predicated region
    $region70: #{tpu_custom_call.1} parent=1 // pred_check
      _
    $region71: #{tpu_custom_call.1} parent=1 // pred_check_branch
      %210 = sbr.rel (0) target = $region73
    $region72: #{tpu_custom_call.1} parent=1 // pred_region
      _
    $region73: #{tpu_custom_call.1} parent=1 // pred_fallthru
      _
    // Predicated region
    $region74: #{tpu_custom_call.1} parent=1 // pred_check
      _
    $region75: #{tpu_custom_call.1} parent=1 // pred_check_branch
      %212 = sbr.rel (0) target = $region77
    $region76: #{tpu_custom_call.1} parent=1 // pred_region
      %s214 = ssub.s32 512, 512
      %215 = vsyncadd [#allocation27], %s214
      %s216 = sshll.u32 [#allocation28], 4
      %s217 = int_to_ptr.vmem [resolvable:$true] %s216
      %222 = dma.hbm_to_vmem [thread:$0]  %s18, 512, %s217, [#allocation27], 128, 128, 8
    $region77: #{tpu_custom_call.1} parent=1 // pred_fallthru
      _
    // Predicated region
    $region78: #{tpu_custom_call.1} parent=1 // pred_check
      _
    $region79: #{tpu_custom_call.1} parent=1 // pred_check_branch
      %224 = sbr.rel (0) target = $region81
    $region80: #{tpu_custom_call.1} parent=1 // pred_region
      _
    $region81: #{tpu_custom_call.1} parent=1 // pred_fallthru
      _
    // Predicated region
    $region82: #{tpu_custom_call.1} parent=1 // pred_check
      _
    $region83: #{tpu_custom_call.1} parent=1 // pred_check_branch
      %226 = sbr.rel (0) target = $region85
    $region84: #{tpu_custom_call.1} parent=1 // pred_region
      %227 = dma.done [#allocation3], 256
    $region85: #{tpu_custom_call.1} parent=1 // pred_fallthru
      _
    // Predicated region
    $region86: #{tpu_custom_call.1} parent=1 // pred_check
      _
    $region87: #{tpu_custom_call.1} parent=1 // pred_check_branch
      %229 = sbr.rel (0) target = $region89
    $region88: #{tpu_custom_call.1} parent=1 // pred_region
      %230 = dma.done [#allocation6], 256
    $region89: #{tpu_custom_call.1} parent=1 // pred_fallthru
      _
    // Predicated region
    $region90: #{tpu_custom_call.1} parent=1 // pred_check
      _
    $region91: #{tpu_custom_call.1} parent=1 // pred_check_branch
      %232 = sbr.rel (0) target = $region93
    $region92: #{tpu_custom_call.1} parent=1 // pred_region
      %233 = dma.done [#allocation6], 256
    $region93: #{tpu_custom_call.1} parent=1 // pred_fallthru
      _
    // Predicated region
    $region94: #{tpu_custom_call.1} parent=1 // pred_check
      _
    $region95: #{tpu_custom_call.1} parent=1 // pred_check_branch
      %235 = sbr.rel (0) target = $region97
    $region96: #{tpu_custom_call.1} parent=1 // pred_region
      %236 = dma.done [#allocation9], 32
    $region97: #{tpu_custom_call.1} parent=1 // pred_fallthru
      _
    // Predicated region
    $region98: #{tpu_custom_call.1} parent=1 // pred_check
      _
    $region99: #{tpu_custom_call.1} parent=1 // pred_check_branch
      %238 = sbr.rel (0) target = $region101
    $region100: #{tpu_custom_call.1} parent=1 // pred_region
      %239 = dma.done [#allocation9], 32
    $region101: #{tpu_custom_call.1} parent=1 // pred_fallthru
      _
    // Predicated region
    $region102: #{tpu_custom_call.1} parent=1 // pred_check
      _
    $region103: #{tpu_custom_call.1} parent=1 // pred_check_branch
      %241 = sbr.rel (0) target = $region105
    $region104: #{tpu_custom_call.1} parent=1 // pred_region
      %242 = dma.done [#allocation12], 32
    $region105: #{tpu_custom_call.1} parent=1 // pred_fallthru
      _
    // Predicated region
    $region106: #{tpu_custom_call.1} parent=1 // pred_check
      _
    $region107: #{tpu_custom_call.1} parent=1 // pred_check_branch
      %244 = sbr.rel (0) target = $region109
    $region108: #{tpu_custom_call.1} parent=1 // pred_region
      %245 = dma.done [#allocation12], 1024
    $region109: #{tpu_custom_call.1} parent=1 // pred_fallthru
      _
    // Predicated region
    $region110: #{tpu_custom_call.1} parent=1 // pred_check
      _
    $region111: #{tpu_custom_call.1} parent=1 // pred_check_branch
      %247 = sbr.rel (0) target = $region113
    $region112: #{tpu_custom_call.1} parent=1 // pred_region
      %248 = dma.done [#allocation15], 32
    $region113: #{tpu_custom_call.1} parent=1 // pred_fallthru
      _
    // Predicated region
    $region114: #{tpu_custom_call.1} parent=1 // pred_check
      _
    $region115: #{tpu_custom_call.1} parent=1 // pred_check_branch
      %250 = sbr.rel (0) target = $region117
    $region116: #{tpu_custom_call.1} parent=1 // pred_region
      %251 = dma.done [#allocation15], 16
    $region117: #{tpu_custom_call.1} parent=1 // pred_fallthru
      _
    // Predicated region
    $region118: #{tpu_custom_call.1} parent=1 // pred_check
      _
    $region119: #{tpu_custom_call.1} parent=1 // pred_check_branch
      %253 = sbr.rel (0) target = $region121
    $region120: #{tpu_custom_call.1} parent=1 // pred_region
      %254 = dma.done [#allocation18], 16
    $region121: #{tpu_custom_call.1} parent=1 // pred_fallthru
      _
    // Predicated region
    $region122: #{tpu_custom_call.1} parent=1 // pred_check
      _
    $region123: #{tpu_custom_call.1} parent=1 // pred_check_branch
      %256 = sbr.rel (0) target = $region125
    $region124: #{tpu_custom_call.1} parent=1 // pred_region
      %257 = dma.done [#allocation18], 512
    $region125: #{tpu_custom_call.1} parent=1 // pred_fallthru
      _
    // Predicated region
    $region126: #{tpu_custom_call.1} parent=1 // pred_check
      _
    $region127: #{tpu_custom_call.1} parent=1 // pred_check_branch
      %259 = sbr.rel (0) target = $region129
    $region128: #{tpu_custom_call.1} parent=1 // pred_region
      %260 = dma.done [#allocation21], 16
    $region129: #{tpu_custom_call.1} parent=1 // pred_fallthru
      _
    // Predicated region
    $region130: #{tpu_custom_call.1} parent=1 // pred_check
      _
    $region131: #{tpu_custom_call.1} parent=1 // pred_check_branch
      %262 = sbr.rel (0) target = $region133
    $region132: #{tpu_custom_call.1} parent=1 // pred_region
      %263 = dma.done [#allocation21], 512
    $region133: #{tpu_custom_call.1} parent=1 // pred_fallthru
      _
    // Predicated region
    $region134: #{tpu_custom_call.1} parent=1 // pred_check
      _
    $region135: #{tpu_custom_call.1} parent=1 // pred_check_branch
      %265 = sbr.rel (0) target = $region137
    $region136: #{tpu_custom_call.1} parent=1 // pred_region
      %266 = dma.done [#allocation24], 16
    $region137: #{tpu_custom_call.1} parent=1 // pred_fallthru
      _
    // Predicated region
    $region138: #{tpu_custom_call.1} parent=1 // pred_check
      _
    $region139: #{tpu_custom_call.1} parent=1 // pred_check_branch
      %268 = sbr.rel (0) target = $region141
    $region140: #{tpu_custom_call.1} parent=1 // pred_region
      %269 = dma.done [#allocation24], 16
    $region141: #{tpu_custom_call.1} parent=1 // pred_fallthru
      _
    // Predicated region
    $region142: #{tpu_custom_call.1} parent=1 // pred_check
      _
    $region143: #{tpu_custom_call.1} parent=1 // pred_check_branch
      %271 = sbr.rel (0) target = $region145
    $region144: #{tpu_custom_call.1} parent=1 // pred_region
      %272 = dma.done [#allocation27], 16
    $region145: #{tpu_custom_call.1} parent=1 // pred_fallthru
      _
    // Predicated region
    $region146: #{tpu_custom_call.1} parent=1 // pred_check
      _
    $region147: #{tpu_custom_call.1} parent=1 // pred_check_branch
      %274 = sbr.rel (0) target = $region149
    $region148: #{tpu_custom_call.1} parent=1 // pred_region
      %275 = dma.done [#allocation27], 512
    $region149: #{tpu_custom_call.1} parent=1 // pred_fallthru
      _
    %v276 = vld [vmem:[#allocation2] sm:$0xff]
    %v277 = vld [vmem:[#allocation2 + $0x8] sm:$0xff]
    %v278 = vld [vmem:[#allocation5] sm:$0xff]
    %v279 = vld [vmem:[#allocation5 + $0x8] sm:$0xff]
    %v280 = vld [vmem:[#allocation13] sm:$0xff]
    %v281 = vld [vmem:[#allocation13 + $0x8] sm:$0xff]
    %v282 = vld [vmem:[#allocation13 + $0x10] sm:$0xff]
    %v283 = vld [vmem:[#allocation13 + $0x18] sm:$0xff]
    %v284 = vld [vmem:[#allocation13 + $0x20] sm:$0xff]
    %v285 = vld [vmem:[#allocation13 + $0x28] sm:$0xff]
    %v286 = vld [vmem:[#allocation13 + $0x30] sm:$0xff]
    %v287 = vld [vmem:[#allocation13 + $0x38] sm:$0xff]
    %v288 = vld [vmem:[#allocation14] sm:$0x3]
    %v289 = vld [vmem:[#allocation16] sm:$0x1]
    %v290 = vld [vmem:[#allocation17] sm:$0x1]
    %v291 = vld [vmem:[%s10] sm:$0xff]
    %v292 = vld [vmem:[%s10 + $0x8] sm:$0xff]
    %v293 = vld [vmem:[%s10 + $0x10] sm:$0xff]
    %v294 = vld [vmem:[%s10 + $0x18] sm:$0xff]
    %v295 = vld [vmem:[#allocation19] sm:$0xff]
    %v296 = vld [vmem:[#allocation19 + $0x8] sm:$0xff]
    %v297 = vld [vmem:[#allocation19 + $0x10] sm:$0xff]
    %v298 = vld [vmem:[#allocation19 + $0x18] sm:$0xff]
    %v299 = vld [vmem:[#allocation20] sm:$0x1]
    %v300 = vld [vmem:[#allocation7] sm:$0xff]
    %v301 = vld [vmem:[#allocation7 + $0x8] sm:$0xff]
    %v303 = vlaneseq
    %v304 = vshrl.u32 %v303, 7
    %v305 = vsub.s32 0, %v304
    %v306 = vrot.slane %v288, %v305
    %v307 = vlaneseq
    %v308 = vshrl.u32 %v307, 7
    %v309 = vsub.s32 1, %v308
    %v310 = vrot.slane %v288, %v309
    %vm313 = vcmask 261120
    %v315 = vsel %vm313, %v300, 0
    %v318 = vsel %vm313, %v301, 0
    %320 = vmatprep.subr.mxu0 %v281
    %321 = vmatpush1.msra.mxu0 %v280
    %322 = vmatprep.subr.mxu0 %v283
    %323 = vmatpush1.msra.mxu0 %v282
    %324 = vmatprep.subr.mxu0 %v285
    %325 = vmatpush1.msra.mxu0 %v284
    %326 = vmatprep.subr.mxu0 %v287
    %327 = vmatpush1.msra.mxu0 %v286
    %328 = vmatprep.subr.mxu0 0.0
    %329 = vmatpush1.msra.mxu0 0.0
    %330 = vmatprep.subr.mxu0 0.0
    %331 = vmatpush1.msra.mxu0 0.0
    %332 = vmatprep.subr.mxu0 0.0
    %333 = vmatpush1.msra.mxu0 0.0
    %334 = vmatprep.subr.mxu0 0.0
    %335 = vmatpush1.msra.mxu0 0.0
    %336 = vmatprep.subr.mxu0 0.0
    %337 = vmatpush1.msra.mxu0 0.0
    %338 = vmatprep.subr.mxu0 0.0
    %339 = vmatpush1.msra.mxu0 0.0
    %340 = vmatprep.subr.mxu0 0.0
    %341 = vmatpush1.msra.mxu0 0.0
    %342 = vmatprep.subr.mxu0 0.0
    %343 = vmatpush1.msra.mxu0 0.0
    %344 = vmatprep.subr.mxu0 0.0
    %345 = vmatpush1.msra.mxu0 0.0
    %346 = vmatprep.subr.mxu0 0.0
    %347 = vmatpush1.msra.mxu0 0.0
    %348 = vmatprep.subr.mxu0 0.0
    %349 = vmatpush1.msra.mxu0 0.0
    %350 = vmatprep.subr.mxu0 0.0
    %351 = vmatpush1.msra.mxu0 0.0
    %352 = vmatprep.subr.mxu0 0.0
    %353 = vmatpush1.msra.mxu0 0.0
    %354 = vmatprep.subr.mxu0 0.0
    %355 = vmatpush1.msra.mxu0 0.0
    %356 = vmatprep.subr.mxu0 0.0
    %357 = vmatpush1.msra.mxu0 0.0
    %358 = vmatprep.subr.mxu0 0.0
    %359 = vmatpush1.msra.mxu0 0.0
    %360 = vmatprep.subr.mxu0 0.0
    %361 = vmatpush1.msra.mxu0 0.0
    %362 = vmatprep.subr.mxu0 0.0
    %363 = vmatpush1.msra.mxu0 0.0
    %364 = vmatprep.subr.mxu0 0.0
    %365 = vmatpush1.msra.mxu0 0.0
    %366 = vmatprep.subr.mxu0 0.0
    %367 = vmatpush1.msra.mxu0 0.0
    %368 = vmatprep.subr.mxu0 0.0
    %369 = vmatpush1.msra.mxu0 0.0
    %370 = vmatprep.subr.mxu0 0.0
    %371 = vmatpush1.msra.mxu0 0.0
    %372 = vmatprep.subr.mxu0 0.0
    %373 = vmatpush1.msra.mxu0 0.0
    %374 = vmatprep.subr.mxu0 0.0
    %375 = vmatpush1.msra.mxu0 0.0
    %376 = vmatprep.subr.mxu0 0.0
    %377 = vmatpush1.msra.mxu0 0.0
    %378 = vmatprep.subr.mxu0 0.0
    %379 = vmatpush1.msra.mxu0 0.0
    %380 = vmatprep.subr.mxu0 0.0
    %381 = vmatpush1.msra.mxu0 0.0
    %382 = vmatprep.subr.mxu0 0.0
    %383 = vmatpush1.msra.mxu0 0.0
    %384 = vmatprep.mubr.f32.mxu0 0.0
    %385 = vmatmul.mubr.f32.gmra.mrb[0].mxu0 %v315
    %v386 = vpop.f32.mrb[0].mxu0
    %v387 = vadd.f32 %v306, %v386
    %v388 = vpop.f32.mrb[0].mxu0
    %v389 = vadd.f32 %v310, %v388
    %390 = vmatprep.mubr.f32.mxu0 0.0
    %391 = vmatmul.mubr.f32.gmra.mrb[0].mxu0 %v318
    %v392 = vpop.f32.mrb[0].mxu0
    %v393 = vadd.f32 %v306, %v392
    %v394 = vpop.f32.mrb[0].mxu0
    %v395 = vadd.f32 %v310, %v394
    %396 = vdwg.mxu0
    %v398 = vlaneseq
    %v399 = vshrl.u32 %v398, 7
    %v400 = vsub.s32 0, %v399
    %v401 = vrot.slane %v289, %v400
    %vm403 = vcmask 64512
    %v405 = vsel %vm403, %v276, 0
    %407 = vmatprep.subr.mxu0 0.0
    %408 = vmatpush1.msra.mxu0 %v387
    %409 = vmatprep.subr.mxu0 0.0
    %410 = vmatpush1.msra.mxu0 0.0
    %411 = vmatprep.subr.mxu0 0.0
    %412 = vmatpush1.msra.mxu0 0.0
    %413 = vmatprep.subr.mxu0 0.0
    %414 = vmatpush1.msra.mxu0 0.0
    %415 = vmatprep.subr.mxu0 0.0
    %416 = vmatpush1.msra.mxu0 0.0
    %417 = vmatprep.subr.mxu0 0.0
    %418 = vmatpush1.msra.mxu0 0.0
    %419 = vmatprep.subr.mxu0 0.0
    %420 = vmatpush1.msra.mxu0 0.0
    %421 = vmatprep.subr.mxu0 0.0
    %422 = vmatpush1.msra.mxu0 0.0
    %423 = vmatprep.subr.mxu0 0.0
    %424 = vmatpush1.msra.mxu0 0.0
    %425 = vmatprep.subr.mxu0 0.0
    %426 = vmatpush1.msra.mxu0 0.0
    %427 = vmatprep.subr.mxu0 0.0
    %428 = vmatpush1.msra.mxu0 0.0
    %429 = vmatprep.subr.mxu0 0.0
    %430 = vmatpush1.msra.mxu0 0.0
    %431 = vmatprep.subr.mxu0 0.0
    %432 = vmatpush1.msra.mxu0 0.0
    %433 = vmatprep.subr.mxu0 0.0
    %434 = vmatpush1.msra.mxu0 0.0
    %435 = vmatprep.subr.mxu0 0.0
    %436 = vmatpush1.msra.mxu0 0.0
    %437 = vmatprep.subr.mxu0 0.0
    %438 = vmatpush1.msra.mxu0 0.0
    %439 = vmatprep.subr.mxu0 0.0
    %440 = vmatpush1.msra.mxu0 0.0
    %441 = vmatprep.subr.mxu0 0.0
    %442 = vmatpush1.msra.mxu0 0.0
    %443 = vmatprep.subr.mxu0 0.0
    %444 = vmatpush1.msra.mxu0 0.0
    %445 = vmatprep.subr.mxu0 0.0
    %446 = vmatpush1.msra.mxu0 0.0
    %447 = vmatprep.subr.mxu0 0.0
    %448 = vmatpush1.msra.mxu0 0.0
    %449 = vmatprep.subr.mxu0 0.0
    %450 = vmatpush1.msra.mxu0 0.0
    %451 = vmatprep.subr.mxu0 0.0
    %452 = vmatpush1.msra.mxu0 0.0
    %453 = vmatprep.subr.mxu0 0.0
    %454 = vmatpush1.msra.mxu0 0.0
    %455 = vmatprep.subr.mxu0 0.0
    %456 = vmatpush1.msra.mxu0 0.0
    %457 = vmatprep.subr.mxu0 0.0
    %458 = vmatpush1.msra.mxu0 0.0
    %459 = vmatprep.subr.mxu0 0.0
    %460 = vmatpush1.msra.mxu0 0.0
    %461 = vmatprep.subr.mxu0 0.0
    %462 = vmatpush1.msra.mxu0 0.0
    %463 = vmatprep.subr.mxu0 0.0
    %464 = vmatpush1.msra.mxu0 0.0
    %465 = vmatprep.subr.mxu0 0.0
    %466 = vmatpush1.msra.mxu0 0.0
    %467 = vmatprep.subr.mxu0 0.0
    %468 = vmatpush1.msra.mxu0 0.0
    %469 = vmatprep.subr.mxu0 0.0
    %470 = vmatpush1.msra.mxu0 0.0
    %471 = vmatprep.mubr.f32.mxu0 0.0
    %472 = vmatmul.mubr.f32.gmra.mrb[0].mxu0 %v405
    %v473 = vpop.f32.mrb[0].mxu0
    %v474 = vadd.f32 %v401, %v473
    %v475 = vpop.f32.mrb[0].mxu0
    %476 = vdwg.mxu0
    %v478 = vsel %vm403, %v277, 0
    %480 = vmatprep.subr.mxu0 0.0
    %481 = vmatpush1.msra.mxu0 %v393
    %482 = vmatprep.subr.mxu0 0.0
    %483 = vmatpush1.msra.mxu0 0.0
    %484 = vmatprep.subr.mxu0 0.0
    %485 = vmatpush1.msra.mxu0 0.0
    %486 = vmatprep.subr.mxu0 0.0
    %487 = vmatpush1.msra.mxu0 0.0
    %488 = vmatprep.subr.mxu0 0.0
    %489 = vmatpush1.msra.mxu0 0.0
    %490 = vmatprep.subr.mxu0 0.0
    %491 = vmatpush1.msra.mxu0 0.0
    %492 = vmatprep.subr.mxu0 0.0
    %493 = vmatpush1.msra.mxu0 0.0
    %494 = vmatprep.subr.mxu0 0.0
    %495 = vmatpush1.msra.mxu0 0.0
    %496 = vmatprep.subr.mxu0 0.0
    %497 = vmatpush1.msra.mxu0 0.0
    %498 = vmatprep.subr.mxu0 0.0
    %499 = vmatpush1.msra.mxu0 0.0
    %500 = vmatprep.subr.mxu0 0.0
    %501 = vmatpush1.msra.mxu0 0.0
    %502 = vmatprep.subr.mxu0 0.0
    %503 = vmatpush1.msra.mxu0 0.0
    %504 = vmatprep.subr.mxu0 0.0
    %505 = vmatpush1.msra.mxu0 0.0
    %506 = vmatprep.subr.mxu0 0.0
    %507 = vmatpush1.msra.mxu0 0.0
    %508 = vmatprep.subr.mxu0 0.0
    %509 = vmatpush1.msra.mxu0 0.0
    %510 = vmatprep.subr.mxu0 0.0
    %511 = vmatpush1.msra.mxu0 0.0
    %512 = vmatprep.subr.mxu0 0.0
    %513 = vmatpush1.msra.mxu0 0.0
    %514 = vmatprep.subr.mxu0 0.0
    %515 = vmatpush1.msra.mxu0 0.0
    %516 = vmatprep.subr.mxu0 0.0
    %517 = vmatpush1.msra.mxu0 0.0
    %518 = vmatprep.subr.mxu0 0.0
    %519 = vmatpush1.msra.mxu0 0.0
    %520 = vmatprep.subr.mxu0 0.0
    %521 = vmatpush1.msra.mxu0 0.0
    %522 = vmatprep.subr.mxu0 0.0
    %523 = vmatpush1.msra.mxu0 0.0
    %524 = vmatprep.subr.mxu0 0.0
    %525 = vmatpush1.msra.mxu0 0.0
    %526 = vmatprep.subr.mxu0 0.0
    %527 = vmatpush1.msra.mxu0 0.0
    %528 = vmatprep.subr.mxu0 0.0
    %529 = vmatpush1.msra.mxu0 0.0
    %530 = vmatprep.subr.mxu0 0.0
    %531 = vmatpush1.msra.mxu0 0.0
    %532 = vmatprep.subr.mxu0 0.0
    %533 = vmatpush1.msra.mxu0 0.0
    %534 = vmatprep.subr.mxu0 0.0
    %535 = vmatpush1.msra.mxu0 0.0
    %536 = vmatprep.subr.mxu0 0.0
    %537 = vmatpush1.msra.mxu0 0.0
    %538 = vmatprep.subr.mxu0 0.0
    %539 = vmatpush1.msra.mxu0 0.0
    %540 = vmatprep.subr.mxu0 0.0
    %541 = vmatpush1.msra.mxu0 0.0
    %542 = vmatprep.subr.mxu0 0.0
    %543 = vmatpush1.msra.mxu0 0.0
    %544 = vmatprep.mubr.f32.mxu0 0.0
    %545 = vmatmul.mubr.f32.gmra.mrb[0].mxu0 %v478
    %v546 = vpop.f32.mrb[0].mxu0
    %v547 = vadd.f32 %v401, %v546
    %v548 = vpop.f32.mrb[0].mxu0
    %549 = vdwg.mxu0
    %v551 = vlaneseq
    %v552 = vshrl.u32 %v551, 7
    %v553 = vsub.s32 0, %v552
    %v554 = vrot.slane %v290, %v553
    %557 = vrot.lane.b32.xlu0 %v387, 96
    %v558 = vpop.permute.xlu0 %557
    %v561 = vsel %vm403, %v278, 0
    %563 = vmatprep.subr.mxu0 0.0
    %564 = vmatpush1.msra.mxu0 %v558
    %565 = vmatprep.subr.mxu0 0.0
    %566 = vmatpush1.msra.mxu0 0.0
    %567 = vmatprep.subr.mxu0 0.0
    %568 = vmatpush1.msra.mxu0 0.0
    %569 = vmatprep.subr.mxu0 0.0
    %570 = vmatpush1.msra.mxu0 0.0
    %571 = vmatprep.subr.mxu0 0.0
    %572 = vmatpush1.msra.mxu0 0.0
    %573 = vmatprep.subr.mxu0 0.0
    %574 = vmatpush1.msra.mxu0 0.0
    %575 = vmatprep.subr.mxu0 0.0
    %576 = vmatpush1.msra.mxu0 0.0
    %577 = vmatprep.subr.mxu0 0.0
    %578 = vmatpush1.msra.mxu0 0.0
    %579 = vmatprep.subr.mxu0 0.0
    %580 = vmatpush1.msra.mxu0 0.0
    %581 = vmatprep.subr.mxu0 0.0
    %582 = vmatpush1.msra.mxu0 0.0
    %583 = vmatprep.subr.mxu0 0.0
    %584 = vmatpush1.msra.mxu0 0.0
    %585 = vmatprep.subr.mxu0 0.0
    %586 = vmatpush1.msra.mxu0 0.0
    %587 = vmatprep.subr.mxu0 0.0
    %588 = vmatpush1.msra.mxu0 0.0
    %589 = vmatprep.subr.mxu0 0.0
    %590 = vmatpush1.msra.mxu0 0.0
    %591 = vmatprep.subr.mxu0 0.0
    %592 = vmatpush1.msra.mxu0 0.0
    %593 = vmatprep.subr.mxu0 0.0
    %594 = vmatpush1.msra.mxu0 0.0
    %595 = vmatprep.subr.mxu0 0.0
    %596 = vmatpush1.msra.mxu0 0.0
    %597 = vmatprep.subr.mxu0 0.0
    %598 = vmatpush1.msra.mxu0 0.0
    %599 = vmatprep.subr.mxu0 0.0
    %600 = vmatpush1.msra.mxu0 0.0
    %601 = vmatprep.subr.mxu0 0.0
    %602 = vmatpush1.msra.mxu0 0.0
    %603 = vmatprep.subr.mxu0 0.0
    %604 = vmatpush1.msra.mxu0 0.0
    %605 = vmatprep.subr.mxu0 0.0
    %606 = vmatpush1.msra.mxu0 0.0
    %607 = vmatprep.subr.mxu0 0.0
    %608 = vmatpush1.msra.mxu0 0.0
    %609 = vmatprep.subr.mxu0 0.0
    %610 = vmatpush1.msra.mxu0 0.0
    %611 = vmatprep.subr.mxu0 0.0
    %612 = vmatpush1.msra.mxu0 0.0
    %613 = vmatprep.subr.mxu0 0.0
    %614 = vmatpush1.msra.mxu0 0.0
    %615 = vmatprep.subr.mxu0 0.0
    %616 = vmatpush1.msra.mxu0 0.0
    %617 = vmatprep.subr.mxu0 0.0
    %618 = vmatpush1.msra.mxu0 0.0
    %619 = vmatprep.subr.mxu0 0.0
    %620 = vmatpush1.msra.mxu0 0.0
    %621 = vmatprep.subr.mxu0 0.0
    %622 = vmatpush1.msra.mxu0 0.0
    %623 = vmatprep.subr.mxu0 0.0
    %624 = vmatpush1.msra.mxu0 0.0
    %625 = vmatprep.subr.mxu0 0.0
    %626 = vmatpush1.msra.mxu0 0.0
    %627 = vmatprep.mubr.f32.mxu0 0.0
    %628 = vmatmul.mubr.f32.gmra.mrb[0].mxu0 %v561
    %v629 = vpop.f32.mrb[0].mxu0
    %v630 = vadd.f32 %v554, %v629
    %v631 = vpop.f32.mrb[0].mxu0
    %632 = vdwg.mxu0
    %634 = vrot.lane.b32.xlu0 %v393, 96
    %v635 = vpop.permute.xlu0 %634
    %v638 = vsel %vm403, %v279, 0
    %640 = vmatprep.subr.mxu0 0.0
    %641 = vmatpush1.msra.mxu0 %v635
    %642 = vmatprep.subr.mxu0 0.0
    %643 = vmatpush1.msra.mxu0 0.0
    %644 = vmatprep.subr.mxu0 0.0
    %645 = vmatpush1.msra.mxu0 0.0
    %646 = vmatprep.subr.mxu0 0.0
    %647 = vmatpush1.msra.mxu0 0.0
    %648 = vmatprep.subr.mxu0 0.0
    %649 = vmatpush1.msra.mxu0 0.0
    %650 = vmatprep.subr.mxu0 0.0
    %651 = vmatpush1.msra.mxu0 0.0
    %652 = vmatprep.subr.mxu0 0.0
    %653 = vmatpush1.msra.mxu0 0.0
    %654 = vmatprep.subr.mxu0 0.0
    %655 = vmatpush1.msra.mxu0 0.0
    %656 = vmatprep.subr.mxu0 0.0
    %657 = vmatpush1.msra.mxu0 0.0
    %658 = vmatprep.subr.mxu0 0.0
    %659 = vmatpush1.msra.mxu0 0.0
    %660 = vmatprep.subr.mxu0 0.0
    %661 = vmatpush1.msra.mxu0 0.0
    %662 = vmatprep.subr.mxu0 0.0
    %663 = vmatpush1.msra.mxu0 0.0
    %664 = vmatprep.subr.mxu0 0.0
    %665 = vmatpush1.msra.mxu0 0.0
    %666 = vmatprep.subr.mxu0 0.0
    %667 = vmatpush1.msra.mxu0 0.0
    %668 = vmatprep.subr.mxu0 0.0
    %669 = vmatpush1.msra.mxu0 0.0
    %670 = vmatprep.subr.mxu0 0.0
    %671 = vmatpush1.msra.mxu0 0.0
    %672 = vmatprep.subr.mxu0 0.0
    %673 = vmatpush1.msra.mxu0 0.0
    %674 = vmatprep.subr.mxu0 0.0
    %675 = vmatpush1.msra.mxu0 0.0
    %676 = vmatprep.subr.mxu0 0.0
    %677 = vmatpush1.msra.mxu0 0.0
    %678 = vmatprep.subr.mxu0 0.0
    %679 = vmatpush1.msra.mxu0 0.0
    %680 = vmatprep.subr.mxu0 0.0
    %681 = vmatpush1.msra.mxu0 0.0
    %682 = vmatprep.subr.mxu0 0.0
    %683 = vmatpush1.msra.mxu0 0.0
    %684 = vmatprep.subr.mxu0 0.0
    %685 = vmatpush1.msra.mxu0 0.0
    %686 = vmatprep.subr.mxu0 0.0
    %687 = vmatpush1.msra.mxu0 0.0
    %688 = vmatprep.subr.mxu0 0.0
    %689 = vmatpush1.msra.mxu0 0.0
    %690 = vmatprep.subr.mxu0 0.0
    %691 = vmatpush1.msra.mxu0 0.0
    %692 = vmatprep.subr.mxu0 0.0
    %693 = vmatpush1.msra.mxu0 0.0
    %694 = vmatprep.subr.mxu0 0.0
    %695 = vmatpush1.msra.mxu0 0.0
    %696 = vmatprep.subr.mxu0 0.0
    %697 = vmatpush1.msra.mxu0 0.0
    %698 = vmatprep.subr.mxu0 0.0
    %699 = vmatpush1.msra.mxu0 0.0
    %700 = vmatprep.subr.mxu0 0.0
    %701 = vmatpush1.msra.mxu0 0.0
    %702 = vmatprep.subr.mxu0 0.0
    %703 = vmatpush1.msra.mxu0 0.0
    %704 = vmatprep.mubr.f32.mxu0 0.0
    %705 = vmatmul.mubr.f32.gmra.mrb[0].mxu0 %v638
    %v706 = vpop.f32.mrb[0].mxu0
    %v707 = vadd.f32 %v554, %v706
    %v708 = vpop.f32.mrb[0].mxu0
    %709 = vdwg.mxu0
    %v711 = vsel %vm313, %v630, 0
    %v714 = vsel %vm313, %v707, 0
    %716 = vmatprep.subr.mxu0 0.0
    %717 = vmatpush1.msra.mxu0 %v295
    %718 = vmatprep.subr.mxu0 0.0
    %719 = vmatpush1.msra.mxu0 %v296
    %720 = vmatprep.subr.mxu0 0.0
    %721 = vmatpush1.msra.mxu0 %v297
    %722 = vmatprep.subr.mxu0 0.0
    %723 = vmatpush1.msra.mxu0 %v298
    %724 = vmatprep.subr.mxu0 0.0
    %725 = vmatpush1.msra.mxu0 0.0
    %726 = vmatprep.subr.mxu0 0.0
    %727 = vmatpush1.msra.mxu0 0.0
    %728 = vmatprep.subr.mxu0 0.0
    %729 = vmatpush1.msra.mxu0 0.0
    %730 = vmatprep.subr.mxu0 0.0
    %731 = vmatpush1.msra.mxu0 0.0
    %732 = vmatprep.subr.mxu0 0.0
    %733 = vmatpush1.msra.mxu0 0.0
    %734 = vmatprep.subr.mxu0 0.0
    %735 = vmatpush1.msra.mxu0 0.0
    %736 = vmatprep.subr.mxu0 0.0
    %737 = vmatpush1.msra.mxu0 0.0
    %738 = vmatprep.subr.mxu0 0.0
    %739 = vmatpush1.msra.mxu0 0.0
    %740 = vmatprep.subr.mxu0 0.0
    %741 = vmatpush1.msra.mxu0 0.0
    %742 = vmatprep.subr.mxu0 0.0
    %743 = vmatpush1.msra.mxu0 0.0
    %744 = vmatprep.subr.mxu0 0.0
    %745 = vmatpush1.msra.mxu0 0.0
    %746 = vmatprep.subr.mxu0 0.0
    %747 = vmatpush1.msra.mxu0 0.0
    %748 = vmatprep.subr.mxu0 0.0
    %749 = vmatpush1.msra.mxu0 0.0
    %750 = vmatprep.subr.mxu0 0.0
    %751 = vmatpush1.msra.mxu0 0.0
    %752 = vmatprep.subr.mxu0 0.0
    %753 = vmatpush1.msra.mxu0 0.0
    %754 = vmatprep.subr.mxu0 0.0
    %755 = vmatpush1.msra.mxu0 0.0
    %756 = vmatprep.subr.mxu0 0.0
    %757 = vmatpush1.msra.mxu0 0.0
    %758 = vmatprep.subr.mxu0 0.0
    %759 = vmatpush1.msra.mxu0 0.0
    %760 = vmatprep.subr.mxu0 0.0
    %761 = vmatpush1.msra.mxu0 0.0
    %762 = vmatprep.subr.mxu0 0.0
    %763 = vmatpush1.msra.mxu0 0.0
    %764 = vmatprep.subr.mxu0 0.0
    %765 = vmatpush1.msra.mxu0 0.0
    %766 = vmatprep.subr.mxu0 0.0
    %767 = vmatpush1.msra.mxu0 0.0
    %768 = vmatprep.subr.mxu0 0.0
    %769 = vmatpush1.msra.mxu0 0.0
    %770 = vmatprep.subr.mxu0 0.0
    %771 = vmatpush1.msra.mxu0 0.0
    %772 = vmatprep.subr.mxu0 0.0
    %773 = vmatpush1.msra.mxu0 0.0
    %774 = vmatprep.subr.mxu0 0.0
    %775 = vmatpush1.msra.mxu0 0.0
    %776 = vmatprep.subr.mxu0 0.0
    %777 = vmatpush1.msra.mxu0 0.0
    %778 = vmatprep.subr.mxu0 0.0
    %779 = vmatpush1.msra.mxu0 0.0
    %780 = vmatprep.mubr.f32.mxu0 0.0
    %781 = vmatmul.mubr.f32.gmra.mrb[0].mxu0 %v711
    %v782 = vpop.f32.mrb[0].mxu0
    %v783 = vadd.f32 0.0, %v782
    %v784 = vpop.f32.mrb[0].mxu0
    %785 = vmatprep.mubr.f32.mxu0 0.0
    %786 = vmatmul.mubr.f32.gmra.mrb[0].mxu0 %v714
    %v787 = vpop.f32.mrb[0].mxu0
    %v788 = vadd.f32 0.0, %v787
    %v789 = vpop.f32.mrb[0].mxu0
    %790 = vdwg.mxu0
    %v792 = vsel %vm313, %v474, 0
    %v795 = vsel %vm313, %v547, 0
    %797 = vmatprep.subr.mxu0 0.0
    %798 = vmatpush1.msra.mxu0 %v291
    %799 = vmatprep.subr.mxu0 0.0
    %800 = vmatpush1.msra.mxu0 %v292
    %801 = vmatprep.subr.mxu0 0.0
    %802 = vmatpush1.msra.mxu0 %v293
    %803 = vmatprep.subr.mxu0 0.0
    %804 = vmatpush1.msra.mxu0 %v294
    %805 = vmatprep.subr.mxu0 0.0
    %806 = vmatpush1.msra.mxu0 0.0
    %807 = vmatprep.subr.mxu0 0.0
    %808 = vmatpush1.msra.mxu0 0.0
    %809 = vmatprep.subr.mxu0 0.0
    %810 = vmatpush1.msra.mxu0 0.0
    %811 = vmatprep.subr.mxu0 0.0
    %812 = vmatpush1.msra.mxu0 0.0
    %813 = vmatprep.subr.mxu0 0.0
    %814 = vmatpush1.msra.mxu0 0.0
    %815 = vmatprep.subr.mxu0 0.0
    %816 = vmatpush1.msra.mxu0 0.0
    %817 = vmatprep.subr.mxu0 0.0
    %818 = vmatpush1.msra.mxu0 0.0
    %819 = vmatprep.subr.mxu0 0.0
    %820 = vmatpush1.msra.mxu0 0.0
    %821 = vmatprep.subr.mxu0 0.0
    %822 = vmatpush1.msra.mxu0 0.0
    %823 = vmatprep.subr.mxu0 0.0
    %824 = vmatpush1.msra.mxu0 0.0
    %825 = vmatprep.subr.mxu0 0.0
    %826 = vmatpush1.msra.mxu0 0.0
    %827 = vmatprep.subr.mxu0 0.0
    %828 = vmatpush1.msra.mxu0 0.0
    %829 = vmatprep.subr.mxu0 0.0
    %830 = vmatpush1.msra.mxu0 0.0
    %831 = vmatprep.subr.mxu0 0.0
    %832 = vmatpush1.msra.mxu0 0.0
    %833 = vmatprep.subr.mxu0 0.0
    %834 = vmatpush1.msra.mxu0 0.0
    %835 = vmatprep.subr.mxu0 0.0
    %836 = vmatpush1.msra.mxu0 0.0
    %837 = vmatprep.subr.mxu0 0.0
    %838 = vmatpush1.msra.mxu0 0.0
    %839 = vmatprep.subr.mxu0 0.0
    %840 = vmatpush1.msra.mxu0 0.0
    %841 = vmatprep.subr.mxu0 0.0
    %842 = vmatpush1.msra.mxu0 0.0
    %843 = vmatprep.subr.mxu0 0.0
    %844 = vmatpush1.msra.mxu0 0.0
    %845 = vmatprep.subr.mxu0 0.0
    %846 = vmatpush1.msra.mxu0 0.0
    %847 = vmatprep.subr.mxu0 0.0
    %848 = vmatpush1.msra.mxu0 0.0
    %849 = vmatprep.subr.mxu0 0.0
    %850 = vmatpush1.msra.mxu0 0.0
    %851 = vmatprep.subr.mxu0 0.0
    %852 = vmatpush1.msra.mxu0 0.0
    %853 = vmatprep.subr.mxu0 0.0
    %854 = vmatpush1.msra.mxu0 0.0
    %855 = vmatprep.subr.mxu0 0.0
    %856 = vmatpush1.msra.mxu0 0.0
    %857 = vmatprep.subr.mxu0 0.0
    %858 = vmatpush1.msra.mxu0 0.0
    %859 = vmatprep.subr.mxu0 0.0
    %860 = vmatpush1.msra.mxu0 0.0
    %861 = vmatprep.mubr.f32.mxu0 0.0
    %862 = vmatmul.mubr.f32.gmra.mrb[0].mxu0 %v792
    %v863 = vpop.f32.mrb[0].mxu0
    %v864 = vadd.f32 %v783, %v863
    %v865 = vpop.f32.mrb[0].mxu0
    %866 = vmatprep.mubr.f32.mxu0 0.0
    %867 = vmatmul.mubr.f32.gmra.mrb[0].mxu0 %v795
    %v868 = vpop.f32.mrb[0].mxu0
    %v869 = vadd.f32 %v788, %v868
    %v870 = vpop.f32.mrb[0].mxu0
    %871 = vdwg.mxu0
    %v873 = vlaneseq
    %v874 = vshrl.u32 %v873, 7
    %v875 = vsub.s32 0, %v874
    %v876 = vrot.slane %v299, %v875
    %v878 = vadd.f32 %v864, %v876
    %v879 = vadd.f32 %v869, %v876
    %880 = vrot.lane.b32.xlu0 %v387, 64
    %v881 = vpop.permute.xlu0 %880
    %882 = vrot.lane.b32.xlu0 %v393, 64
    %v883 = vpop.permute.xlu0 %882
    %v886 = vadd.f32 %v878, %v881
    %v887 = vadd.f32 %v879, %v883
    %v888 = vxor.u32 %v886, 2147483648
    %v889 = vxor.u32 %v887, 2147483648
    %v890 = vmul.f32 %v888, 1.442695
    %v891 = vpow.pop %v890
    %v892 = vmul.f32 %v889, 1.442695
    %v893 = vpow.pop %v892
    %v894 = vadd.f32 %v891, 1.0
    %v895 = vadd.f32 %v893, 1.0
    %v896 = vrcp.pop %v894
    %v897 = vmul.f32 1.0, %v896
    %v898 = vrcp.pop %v895
    %v899 = vmul.f32 1.0, %v898
    %v900 = vmul.f32 %v897, %v389
    %v901 = vmul.f32 %v899, %v395
    %904 = vrot.lane.b32.xlu0 %v900, 64
    %v905 = vpop.permute.xlu0 %904
    %906 = vrot.lane.b32.xlu0 %v901, 64
    %v907 = vpop.permute.xlu0 %906
    %v910 = vadd.f32 %v878, %v905
    %v911 = vadd.f32 %v879, %v907
    %v912 = vtanh.pop %v910
    %v913 = vtanh.pop %v911
    %v914 = vsub.f32 1.0, %v897
    %v915 = vsub.f32 1.0, %v899
    %916 = vrot.lane.b32.xlu0 %v300, 32
    %v917 = vpop.permute.xlu0 %916
    %918 = vrot.lane.b32.xlu0 %v301, 32
    %v919 = vpop.permute.xlu0 %918
    %v922 = vmul.f32 %v914, %v917
    %v923 = vmul.f32 %v915, %v919
    %926 = vrot.lane.b32.xlu0 %v912, 96
    %v927 = vpop.permute.xlu0 %926
    %928 = vrot.lane.b32.xlu0 %v913, 96
    %v929 = vpop.permute.xlu0 %928
    %v932 = vmul.f32 %v897, %v927
    %v933 = vmul.f32 %v899, %v929
    %v934 = vadd.f32 %v922, %v932
    %v935 = vadd.f32 %v923, %v933
    %v936 = vld [vmem:[#allocation8] sm:$0x3]
    %v937 = vlaneseq
    %v938 = vand.u32 %v937, 127
    %v939 = vlaneseq
    %v940 = vshrl.u32 %v939, 7
    %v941 = vsub.s32 0, %v940
    %v942 = vrot.slane %v936, %v941
    %944 = vbcast.lane.b32.xlu0 %v942, 256
    %v945 = vpop.permute.xlu0 %944
    %v946 = vlaneseq
    %v947 = vshrl.u32 %v946, 7
    %v948 = vsub.s32 1, %v947
    %v949 = vrot.slane %v936, %v948
    %951 = vbcast.lane.b32.xlu0 %v949, 256
    %v952 = vpop.permute.xlu0 %951
    %vm953 = vcmp.eq.s32.totalorder %v938, %v945
    %vm954 = vcmp.eq.s32.totalorder %v938, %v952
    %v955 = vsel %vm953, 1, 0
    %v956 = vsel %vm954, 1, 0
    %v957 = vcvt.s32.f32 %v955
    %v958 = vcvt.s32.f32 %v956
    %960 = vrot.lane.b32.xlu0 %v934, 96
    %v961 = vpop.permute.xlu0 %960
    %v964 = vsel %vm403, %v957, 0
    %966 = vmatprep.subr.mxu0 0.0
    %967 = vmatpush1.msra.mxu0 %v961
    %968 = vmatprep.subr.mxu0 0.0
    %969 = vmatpush1.msra.mxu0 0.0
    %970 = vmatprep.subr.mxu0 0.0
    %971 = vmatpush1.msra.mxu0 0.0
    %972 = vmatprep.subr.mxu0 0.0
    %973 = vmatpush1.msra.mxu0 0.0
    %974 = vmatprep.subr.mxu0 0.0
    %975 = vmatpush1.msra.mxu0 0.0
    %976 = vmatprep.subr.mxu0 0.0
    %977 = vmatpush1.msra.mxu0 0.0
    %978 = vmatprep.subr.mxu0 0.0
    %979 = vmatpush1.msra.mxu0 0.0
    %980 = vmatprep.subr.mxu0 0.0
    %981 = vmatpush1.msra.mxu0 0.0
    %982 = vmatprep.subr.mxu0 0.0
    %983 = vmatpush1.msra.mxu0 0.0
    %984 = vmatprep.subr.mxu0 0.0
    %985 = vmatpush1.msra.mxu0 0.0
    %986 = vmatprep.subr.mxu0 0.0
    %987 = vmatpush1.msra.mxu0 0.0
    %988 = vmatprep.subr.mxu0 0.0
    %989 = vmatpush1.msra.mxu0 0.0
    %990 = vmatprep.subr.mxu0 0.0
    %991 = vmatpush1.msra.mxu0 0.0
    %992 = vmatprep.subr.mxu0 0.0
    %993 = vmatpush1.msra.mxu0 0.0
    %994 = vmatprep.subr.mxu0 0.0
    %995 = vmatpush1.msra.mxu0 0.0
    %996 = vmatprep.subr.mxu0 0.0
    %997 = vmatpush1.msra.mxu0 0.0
    %998 = vmatprep.subr.mxu0 0.0
    %999 = vmatpush1.msra.mxu0 0.0
    %1000 = vmatprep.subr.mxu0 0.0
    %1001 = vmatpush1.msra.mxu0 0.0
    %1002 = vmatprep.subr.mxu0 0.0
    %1003 = vmatpush1.msra.mxu0 0.0
    %1004 = vmatprep.subr.mxu0 0.0
    %1005 = vmatpush1.msra.mxu0 0.0
    %1006 = vmatprep.subr.mxu0 0.0
    %1007 = vmatpush1.msra.mxu0 0.0
    %1008 = vmatprep.subr.mxu0 0.0
    %1009 = vmatpush1.msra.mxu0 0.0
    %1010 = vmatprep.subr.mxu0 0.0
    %1011 = vmatpush1.msra.mxu0 0.0
    %1012 = vmatprep.subr.mxu0 0.0
    %1013 = vmatpush1.msra.mxu0 0.0
    %1014 = vmatprep.subr.mxu0 0.0
    %1015 = vmatpush1.msra.mxu0 0.0
    %1016 = vmatprep.subr.mxu0 0.0
    %1017 = vmatpush1.msra.mxu0 0.0
    %1018 = vmatprep.subr.mxu0 0.0
    %1019 = vmatpush1.msra.mxu0 0.0
    %1020 = vmatprep.subr.mxu0 0.0
    %1021 = vmatpush1.msra.mxu0 0.0
    %1022 = vmatprep.subr.mxu0 0.0
    %1023 = vmatpush1.msra.mxu0 0.0
    %1024 = vmatprep.subr.mxu0 0.0
    %1025 = vmatpush1.msra.mxu0 0.0
    %1026 = vmatprep.subr.mxu0 0.0
    %1027 = vmatpush1.msra.mxu0 0.0
    %1028 = vmatprep.subr.mxu0 0.0
    %1029 = vmatpush1.msra.mxu0 0.0
    %1030 = vmatprep.mubr.f32.mxu0 0.0
    %1031 = vmatmul.mubr.f32.gmra.mrb[0].mxu0 %v964
    %v1032 = vpop.f32.mrb[0].mxu0
    %v1033 = vadd.f32 0.0, %v1032
    %v1034 = vpop.f32.mrb[0].mxu0
    %1035 = vdwg.mxu0
    %1037 = vrot.lane.b32.xlu0 %v935, 96
    %v1038 = vpop.permute.xlu0 %1037
    %v1041 = vsel %vm403, %v958, 0
    %1043 = vmatprep.subr.mxu0 0.0
    %1044 = vmatpush1.msra.mxu0 %v1038
    %1045 = vmatprep.subr.mxu0 0.0
    %1046 = vmatpush1.msra.mxu0 0.0
    %1047 = vmatprep.subr.mxu0 0.0
    %1048 = vmatpush1.msra.mxu0 0.0
    %1049 = vmatprep.subr.mxu0 0.0
    %1050 = vmatpush1.msra.mxu0 0.0
    %1051 = vmatprep.subr.mxu0 0.0
    %1052 = vmatpush1.msra.mxu0 0.0
    %1053 = vmatprep.subr.mxu0 0.0
    %1054 = vmatpush1.msra.mxu0 0.0
    %1055 = vmatprep.subr.mxu0 0.0
    %1056 = vmatpush1.msra.mxu0 0.0
    %1057 = vmatprep.subr.mxu0 0.0
    %1058 = vmatpush1.msra.mxu0 0.0
    %1059 = vmatprep.subr.mxu0 0.0
    %1060 = vmatpush1.msra.mxu0 0.0
    %1061 = vmatprep.subr.mxu0 0.0
    %1062 = vmatpush1.msra.mxu0 0.0
    %1063 = vmatprep.subr.mxu0 0.0
    %1064 = vmatpush1.msra.mxu0 0.0
    %1065 = vmatprep.subr.mxu0 0.0
    %1066 = vmatpush1.msra.mxu0 0.0
    %1067 = vmatprep.subr.mxu0 0.0
    %1068 = vmatpush1.msra.mxu0 0.0
    %1069 = vmatprep.subr.mxu0 0.0
    %1070 = vmatpush1.msra.mxu0 0.0
    %1071 = vmatprep.subr.mxu0 0.0
    %1072 = vmatpush1.msra.mxu0 0.0
    %1073 = vmatprep.subr.mxu0 0.0
    %1074 = vmatpush1.msra.mxu0 0.0
    %1075 = vmatprep.subr.mxu0 0.0
    %1076 = vmatpush1.msra.mxu0 0.0
    %1077 = vmatprep.subr.mxu0 0.0
    %1078 = vmatpush1.msra.mxu0 0.0
    %1079 = vmatprep.subr.mxu0 0.0
    %1080 = vmatpush1.msra.mxu0 0.0
    %1081 = vmatprep.subr.mxu0 0.0
    %1082 = vmatpush1.msra.mxu0 0.0
    %1083 = vmatprep.subr.mxu0 0.0
    %1084 = vmatpush1.msra.mxu0 0.0
    %1085 = vmatprep.subr.mxu0 0.0
    %1086 = vmatpush1.msra.mxu0 0.0
    %1087 = vmatprep.subr.mxu0 0.0
    %1088 = vmatpush1.msra.mxu0 0.0
    %1089 = vmatprep.subr.mxu0 0.0
    %1090 = vmatpush1.msra.mxu0 0.0
    %1091 = vmatprep.subr.mxu0 0.0
    %1092 = vmatpush1.msra.mxu0 0.0
    %1093 = vmatprep.subr.mxu0 0.0
    %1094 = vmatpush1.msra.mxu0 0.0
    %1095 = vmatprep.subr.mxu0 0.0
    %1096 = vmatpush1.msra.mxu0 0.0
    %1097 = vmatprep.subr.mxu0 0.0
    %1098 = vmatpush1.msra.mxu0 0.0
    %1099 = vmatprep.subr.mxu0 0.0
    %1100 = vmatpush1.msra.mxu0 0.0
    %1101 = vmatprep.subr.mxu0 0.0
    %1102 = vmatpush1.msra.mxu0 0.0
    %1103 = vmatprep.subr.mxu0 0.0
    %1104 = vmatpush1.msra.mxu0 0.0
    %1105 = vmatprep.subr.mxu0 0.0
    %1106 = vmatpush1.msra.mxu0 0.0
    %1107 = vmatprep.mubr.f32.mxu0 0.0
    %1108 = vmatmul.mubr.f32.gmra.mrb[0].mxu0 %v1041
    %v1109 = vpop.f32.mrb[0].mxu0
    %v1110 = vadd.f32 0.0, %v1109
    %v1111 = vpop.f32.mrb[0].mxu0
    %1112 = vdwg.mxu0
    %v1113 = vld [vmem:[#allocation10] sm:$0x3]
    %v1114 = vlaneseq
    %v1115 = vshrl.u32 %v1114, 7
    %v1116 = vsub.s32 0, %v1115
    %v1117 = vrot.slane %v1113, %v1116
    %1119 = vbcast.lane.b32.xlu0 %v1117, 256
    %v1120 = vpop.permute.xlu0 %1119
    %v1121 = vlaneseq
    %v1122 = vshrl.u32 %v1121, 7
    %v1123 = vsub.s32 1, %v1122
    %v1124 = vrot.slane %v1113, %v1123
    %1126 = vbcast.lane.b32.xlu0 %v1124, 256
    %v1127 = vpop.permute.xlu0 %1126
    %v1128 = vmul.f32 %v1120, %v1033
    %v1129 = vmul.f32 %v1127, %v1110
    %v1130 = vsel %vm313, %v1128, 0.0
    %v1131 = vrot.slane %v1130, 4
    %v1132 = vadd.f32 %v1130, %v1131
    %v1133 = vrot.slane %v1132, 2
    %v1134 = vadd.f32 %v1132, %v1133
    %v1135 = vrot.slane %v1134, 1
    %v1136 = vadd.f32 %v1134, %v1135
    %v1137 = vsel %vm313, %v1129, 0.0
    %v1138 = vrot.slane %v1137, 4
    %v1139 = vadd.f32 %v1137, %v1138
    %v1140 = vrot.slane %v1139, 2
    %v1141 = vadd.f32 %v1139, %v1140
    %v1142 = vrot.slane %v1141, 1
    %v1143 = vadd.f32 %v1141, %v1142
    %v1144 = vld [vmem:[%s17] sm:$0xff]
    %v1145 = vld [vmem:[%s17 + $0x8] sm:$0xff]
    %v1146 = vld [vmem:[%s17 + $0x10] sm:$0xff]
    %v1147 = vld [vmem:[%s17 + $0x18] sm:$0xff]
    %vm1150 = vcmask 1041409
    %v1151 = vsel %vm1150, %v1143, %v1136
    %v1152 = vsel %vm313, %v1151, 0
    %1154 = vmatprep.subr.mxu0 0.0
    %1155 = vmatpush1.msra.mxu0 %v1144
    %1156 = vmatprep.subr.mxu0 0.0
    %1157 = vmatpush1.msra.mxu0 %v1145
    %1158 = vmatprep.subr.mxu0 0.0
    %1159 = vmatpush1.msra.mxu0 %v1146
    %1160 = vmatprep.subr.mxu0 0.0
    %1161 = vmatpush1.msra.mxu0 %v1147
    %1162 = vmatprep.subr.mxu0 0.0
    %1163 = vmatpush1.msra.mxu0 0.0
    %1164 = vmatprep.subr.mxu0 0.0
    %1165 = vmatpush1.msra.mxu0 0.0
    %1166 = vmatprep.subr.mxu0 0.0
    %1167 = vmatpush1.msra.mxu0 0.0
    %1168 = vmatprep.subr.mxu0 0.0
    %1169 = vmatpush1.msra.mxu0 0.0
    %1170 = vmatprep.subr.mxu0 0.0
    %1171 = vmatpush1.msra.mxu0 0.0
    %1172 = vmatprep.subr.mxu0 0.0
    %1173 = vmatpush1.msra.mxu0 0.0
    %1174 = vmatprep.subr.mxu0 0.0
    %1175 = vmatpush1.msra.mxu0 0.0
    %1176 = vmatprep.subr.mxu0 0.0
    %1177 = vmatpush1.msra.mxu0 0.0
    %1178 = vmatprep.subr.mxu0 0.0
    %1179 = vmatpush1.msra.mxu0 0.0
    %1180 = vmatprep.subr.mxu0 0.0
    %1181 = vmatpush1.msra.mxu0 0.0
    %1182 = vmatprep.subr.mxu0 0.0
    %1183 = vmatpush1.msra.mxu0 0.0
    %1184 = vmatprep.subr.mxu0 0.0
    %1185 = vmatpush1.msra.mxu0 0.0
    %1186 = vmatprep.subr.mxu0 0.0
    %1187 = vmatpush1.msra.mxu0 0.0
    %1188 = vmatprep.subr.mxu0 0.0
    %1189 = vmatpush1.msra.mxu0 0.0
    %1190 = vmatprep.subr.mxu0 0.0
    %1191 = vmatpush1.msra.mxu0 0.0
    %1192 = vmatprep.subr.mxu0 0.0
    %1193 = vmatpush1.msra.mxu0 0.0
    %1194 = vmatprep.subr.mxu0 0.0
    %1195 = vmatpush1.msra.mxu0 0.0
    %1196 = vmatprep.subr.mxu0 0.0
    %1197 = vmatpush1.msra.mxu0 0.0
    %1198 = vmatprep.subr.mxu0 0.0
    %1199 = vmatpush1.msra.mxu0 0.0
    %1200 = vmatprep.subr.mxu0 0.0
    %1201 = vmatpush1.msra.mxu0 0.0
    %1202 = vmatprep.subr.mxu0 0.0
    %1203 = vmatpush1.msra.mxu0 0.0
    %1204 = vmatprep.subr.mxu0 0.0
    %1205 = vmatpush1.msra.mxu0 0.0
    %1206 = vmatprep.subr.mxu0 0.0
    %1207 = vmatpush1.msra.mxu0 0.0
    %1208 = vmatprep.subr.mxu0 0.0
    %1209 = vmatpush1.msra.mxu0 0.0
    %1210 = vmatprep.subr.mxu0 0.0
    %1211 = vmatpush1.msra.mxu0 0.0
    %1212 = vmatprep.subr.mxu0 0.0
    %1213 = vmatpush1.msra.mxu0 0.0
    %1214 = vmatprep.subr.mxu0 0.0
    %1215 = vmatpush1.msra.mxu0 0.0
    %1216 = vmatprep.subr.mxu0 0.0
    %1217 = vmatpush1.msra.mxu0 0.0
    %1218 = vmatprep.mubr.f32.mxu0 0.0
    %1219 = vmatmul.mubr.f32.gmra.mrb[0].mxu0 %v1152
    %v1220 = vpop.f32.mrb[0].mxu0
    %v1221 = vadd.f32 0.0, %v1220
    %v1222 = vpop.f32.mrb[0].mxu0
    %1223 = vdwg.mxu0
    %v1224 = vld [vmem:[#allocation25] sm:$0x1]
    %v1226 = vlaneseq
    %v1227 = vshrl.u32 %v1226, 7
    %v1228 = vsub.s32 0, %v1227
    %v1229 = vrot.slane %v1224, %v1228
    %v1231 = vadd.f32 %v1221, %v1229
    %v1232 = vld [vmem:[#allocation22] sm:$0xff]
    %v1233 = vld [vmem:[#allocation22 + $0x8] sm:$0xff]
    %v1234 = vld [vmem:[#allocation22 + $0x10] sm:$0xff]
    %v1235 = vld [vmem:[#allocation22 + $0x18] sm:$0xff]
    %v1236 = vld [vmem:[#allocation23] sm:$0x1]
    %v1238 = vlaneseq
    %v1239 = vshrl.u32 %v1238, 7
    %v1240 = vsub.s32 0, %v1239
    %v1241 = vrot.slane %v1236, %v1240
    %v1244 = vsel %vm313, %v1033, 0
    %v1247 = vsel %vm313, %v1110, 0
    %1249 = vmatprep.subr.mxu0 0.0
    %1250 = vmatpush1.msra.mxu0 %v1232
    %1251 = vmatprep.subr.mxu0 0.0
    %1252 = vmatpush1.msra.mxu0 %v1233
    %1253 = vmatprep.subr.mxu0 0.0
    %1254 = vmatpush1.msra.mxu0 %v1234
    %1255 = vmatprep.subr.mxu0 0.0
    %1256 = vmatpush1.msra.mxu0 %v1235
    %1257 = vmatprep.subr.mxu0 0.0
    %1258 = vmatpush1.msra.mxu0 0.0
    %1259 = vmatprep.subr.mxu0 0.0
    %1260 = vmatpush1.msra.mxu0 0.0
    %1261 = vmatprep.subr.mxu0 0.0
    %1262 = vmatpush1.msra.mxu0 0.0
    %1263 = vmatprep.subr.mxu0 0.0
    %1264 = vmatpush1.msra.mxu0 0.0
    %1265 = vmatprep.subr.mxu0 0.0
    %1266 = vmatpush1.msra.mxu0 0.0
    %1267 = vmatprep.subr.mxu0 0.0
    %1268 = vmatpush1.msra.mxu0 0.0
    %1269 = vmatprep.subr.mxu0 0.0
    %1270 = vmatpush1.msra.mxu0 0.0
    %1271 = vmatprep.subr.mxu0 0.0
    %1272 = vmatpush1.msra.mxu0 0.0
    %1273 = vmatprep.subr.mxu0 0.0
    %1274 = vmatpush1.msra.mxu0 0.0
    %1275 = vmatprep.subr.mxu0 0.0
    %1276 = vmatpush1.msra.mxu0 0.0
    %1277 = vmatprep.subr.mxu0 0.0
    %1278 = vmatpush1.msra.mxu0 0.0
    %1279 = vmatprep.subr.mxu0 0.0
    %1280 = vmatpush1.msra.mxu0 0.0
    %1281 = vmatprep.subr.mxu0 0.0
    %1282 = vmatpush1.msra.mxu0 0.0
    %1283 = vmatprep.subr.mxu0 0.0
    %1284 = vmatpush1.msra.mxu0 0.0
    %1285 = vmatprep.subr.mxu0 0.0
    %1286 = vmatpush1.msra.mxu0 0.0
    %1287 = vmatprep.subr.mxu0 0.0
    %1288 = vmatpush1.msra.mxu0 0.0
    %1289 = vmatprep.subr.mxu0 0.0
    %1290 = vmatpush1.msra.mxu0 0.0
    %1291 = vmatprep.subr.mxu0 0.0
    %1292 = vmatpush1.msra.mxu0 0.0
    %1293 = vmatprep.subr.mxu0 0.0
    %1294 = vmatpush1.msra.mxu0 0.0
    %1295 = vmatprep.subr.mxu0 0.0
    %1296 = vmatpush1.msra.mxu0 0.0
    %1297 = vmatprep.subr.mxu0 0.0
    %1298 = vmatpush1.msra.mxu0 0.0
    %1299 = vmatprep.subr.mxu0 0.0
    %1300 = vmatpush1.msra.mxu0 0.0
    %1301 = vmatprep.subr.mxu0 0.0
    %1302 = vmatpush1.msra.mxu0 0.0
    %1303 = vmatprep.subr.mxu0 0.0
    %1304 = vmatpush1.msra.mxu0 0.0
    %1305 = vmatprep.subr.mxu0 0.0
    %1306 = vmatpush1.msra.mxu0 0.0
    %1307 = vmatprep.subr.mxu0 0.0
    %1308 = vmatpush1.msra.mxu0 0.0
    %1309 = vmatprep.subr.mxu0 0.0
    %1310 = vmatpush1.msra.mxu0 0.0
    %1311 = vmatprep.subr.mxu0 0.0
    %1312 = vmatpush1.msra.mxu0 0.0
    %1313 = vmatprep.mubr.f32.mxu0 0.0
    %1314 = vmatmul.mubr.f32.gmra.mrb[0].mxu0 %v1244
    %v1315 = vpop.f32.mrb[0].mxu0
    %v1316 = vadd.f32 %v1241, %v1315
    %v1317 = vpop.f32.mrb[0].mxu0
    %1318 = vmatprep.mubr.f32.mxu0 0.0
    %1319 = vmatmul.mubr.f32.gmra.mrb[0].mxu0 %v1247
    %v1320 = vpop.f32.mrb[0].mxu0
    %v1321 = vadd.f32 %v1241, %v1320
    %v1322 = vpop.f32.mrb[0].mxu0
    %1323 = vdwg.mxu0
    %v1326 = vunpack.c.l.s4 1966171168
    %v1327 = vunpack.c.0.s8 %v1326
    %v1328 = vlaneseq
    %v1329 = vshrl.u32 %v1328, 7
    %v1330 = vsub.s32 %v1327, %v1329
    %v1331 = vrot.slane %v1231, %v1330
    %v1332 = vcombine.high %v1331, %v1331
    %v1334 = vunpack.c.l.s4 1966171168
    %v1335 = vunpack.c.0.s8 %v1334
    %v1336 = vlaneseq
    %v1337 = vshrl.u32 %v1336, 7
    %v1338 = vsub.s32 %v1335, %v1337
    %v1339 = vrot.slane %v1331, %v1338
    %v1341 = vunpack.c.l.s4 1966171168
    %v1342 = vunpack.c.0.s8 %v1341
    %v1343 = vlaneseq
    %v1344 = vshrl.u32 %v1343, 7
    %v1345 = vsub.s32 %v1342, %v1344
    %v1346 = vrot.slane %v1332, %v1345
    %v1347 = vlaneseq
    %v1348 = vshrl.u32 %v1347, 7
    %v1349 = vsub.s32 0, %v1348
    %v1350 = vrot.slane %v1339, %v1349
    %v1351 = vlaneseq
    %v1352 = vshrl.u32 %v1351, 7
    %v1353 = vsub.s32 0, %v1352
    %v1354 = vrot.slane %v1346, %v1353
    %v1357 = vadd.f32 %v1350, %v1316
    %v1358 = vadd.f32 %v1354, %v1321
    %v1359 = vxor.u32 %v1357, 2147483648
    %v1360 = vxor.u32 %v1358, 2147483648
    %v1361 = vmul.f32 %v1359, 1.442695
    %v1362 = vpow.pop %v1361
    %v1363 = vmul.f32 %v1360, 1.442695
    %v1364 = vpow.pop %v1363
    %v1365 = vadd.f32 %v1362, 1.0
    %v1366 = vadd.f32 %v1364, 1.0
    %v1367 = vrcp.pop %v1365
    %v1368 = vmul.f32 1.0, %v1367
    %v1369 = vrcp.pop %v1366
    %v1370 = vmul.f32 1.0, %v1369
    %v1371 = vld [vmem:[#allocation26] sm:$0x1]
    %v1373 = vlaneseq
    %v1374 = vshrl.u32 %v1373, 7
    %v1375 = vsub.s32 0, %v1374
    %v1376 = vrot.slane %v1371, %v1375
    %v1378 = vmul.f32 %v1368, %v1376
    %v1379 = vmul.f32 %v1370, %v1376
    %v1380 = vsel %vm313, %v1378, 0.0
    %1381 = vadd.xlane.f32.xlu0 %v1380
    %v1382 = vpop.xlane.xlu0 %1381
    %v1383 = vsel %vm313, %v1379, 0.0
    %1384 = vadd.xlane.f32.xlu0 %v1383
    %v1385 = vpop.xlane.xlu0 %1384
    %v1386 = vld [vmem:[#allocation11] sm:$0x3]
    %v1387 = vmul.f32 %v1382, %v1033
    %v1388 = vmul.f32 %v1385, %v1110
    %v1389 = vlaneseq
    %v1390 = vshrl.u32 %v1389, 7
    %v1391 = vsub.s32 0, %v1390
    %v1392 = vrot.slane %v1386, %v1391
    %1394 = vbcast.lane.b32.xlu0 %v1392, 256
    %v1395 = vpop.permute.xlu0 %1394
    %v1396 = vlaneseq
    %v1397 = vshrl.u32 %v1396, 7
    %v1398 = vsub.s32 1, %v1397
    %v1399 = vrot.slane %v1386, %v1398
    %1401 = vbcast.lane.b32.xlu0 %v1399, 256
    %v1402 = vpop.permute.xlu0 %1401
    %v1403 = vmul.f32 %v1387, %v1395
    %v1404 = vmul.f32 %v1388, %v1402
    %v1405 = vsel %vm313, %v1403, 0.0
    %v1406 = vrot.slane %v1405, 4
    %v1407 = vadd.f32 %v1405, %v1406
    %v1408 = vrot.slane %v1407, 2
    %v1409 = vadd.f32 %v1407, %v1408
    %v1410 = vrot.slane %v1409, 1
    %v1411 = vadd.f32 %v1409, %v1410
    %v1412 = vsel %vm313, %v1404, 0.0
    %v1413 = vrot.slane %v1412, 4
    %v1414 = vadd.f32 %v1412, %v1413
    %v1415 = vrot.slane %v1414, 2
    %v1416 = vadd.f32 %v1414, %v1415
    %v1417 = vrot.slane %v1416, 1
    %v1418 = vadd.f32 %v1416, %v1417
    %v1419 = vld [vmem:[#allocation28] sm:$0xff]
    %v1420 = vld [vmem:[#allocation28 + $0x8] sm:$0xff]
    %v1421 = vld [vmem:[#allocation28 + $0x10] sm:$0xff]
    %v1422 = vld [vmem:[#allocation28 + $0x18] sm:$0xff]
    %v1425 = vsel %vm1150, %v1418, %v1411
    %1427 = vrot.lane.b32.xlu0 %v1221, 96
    %v1428 = vpop.permute.xlu0 %1427
    %v1430 = vsel %vm313, %v1425, 0
    %1432 = vmatprep.subr.mxu0 0.0
    %1433 = vmatpush1.msra.mxu0 %v1419
    %1434 = vmatprep.subr.mxu0 0.0
    %1435 = vmatpush1.msra.mxu0 %v1420
    %1436 = vmatprep.subr.mxu0 0.0
    %1437 = vmatpush1.msra.mxu0 %v1421
    %1438 = vmatprep.subr.mxu0 0.0
    %1439 = vmatpush1.msra.mxu0 %v1422
    %1440 = vmatprep.subr.mxu0 0.0
    %1441 = vmatpush1.msra.mxu0 0.0
    %1442 = vmatprep.subr.mxu0 0.0
    %1443 = vmatpush1.msra.mxu0 0.0
    %1444 = vmatprep.subr.mxu0 0.0
    %1445 = vmatpush1.msra.mxu0 0.0
    %1446 = vmatprep.subr.mxu0 0.0
    %1447 = vmatpush1.msra.mxu0 0.0
    %1448 = vmatprep.subr.mxu0 0.0
    %1449 = vmatpush1.msra.mxu0 0.0
    %1450 = vmatprep.subr.mxu0 0.0
    %1451 = vmatpush1.msra.mxu0 0.0
    %1452 = vmatprep.subr.mxu0 0.0
    %1453 = vmatpush1.msra.mxu0 0.0
    %1454 = vmatprep.subr.mxu0 0.0
    %1455 = vmatpush1.msra.mxu0 0.0
    %1456 = vmatprep.subr.mxu0 0.0
    %1457 = vmatpush1.msra.mxu0 0.0
    %1458 = vmatprep.subr.mxu0 0.0
    %1459 = vmatpush1.msra.mxu0 0.0
    %1460 = vmatprep.subr.mxu0 0.0
    %1461 = vmatpush1.msra.mxu0 0.0
    %1462 = vmatprep.subr.mxu0 0.0
    %1463 = vmatpush1.msra.mxu0 0.0
    %1464 = vmatprep.subr.mxu0 0.0
    %1465 = vmatpush1.msra.mxu0 0.0
    %1466 = vmatprep.subr.mxu0 0.0
    %1467 = vmatpush1.msra.mxu0 0.0
    %1468 = vmatprep.subr.mxu0 0.0
    %1469 = vmatpush1.msra.mxu0 0.0
    %1470 = vmatprep.subr.mxu0 0.0
    %1471 = vmatpush1.msra.mxu0 0.0
    %1472 = vmatprep.subr.mxu0 0.0
    %1473 = vmatpush1.msra.mxu0 0.0
    %1474 = vmatprep.subr.mxu0 0.0
    %1475 = vmatpush1.msra.mxu0 0.0
    %1476 = vmatprep.subr.mxu0 0.0
    %1477 = vmatpush1.msra.mxu0 0.0
    %1478 = vmatprep.subr.mxu0 0.0
    %1479 = vmatpush1.msra.mxu0 0.0
    %1480 = vmatprep.subr.mxu0 0.0
    %1481 = vmatpush1.msra.mxu0 0.0
    %1482 = vmatprep.subr.mxu0 0.0
    %1483 = vmatpush1.msra.mxu0 0.0
    %1484 = vmatprep.subr.mxu0 0.0
    %1485 = vmatpush1.msra.mxu0 0.0
    %1486 = vmatprep.subr.mxu0 0.0
    %1487 = vmatpush1.msra.mxu0 0.0
    %1488 = vmatprep.subr.mxu0 0.0
    %1489 = vmatpush1.msra.mxu0 0.0
    %1490 = vmatprep.subr.mxu0 0.0
    %1491 = vmatpush1.msra.mxu0 0.0
    %1492 = vmatprep.subr.mxu0 0.0
    %1493 = vmatpush1.msra.mxu0 0.0
    %1494 = vmatprep.subr.mxu0 0.0
    %1495 = vmatpush1.msra.mxu0 0.0
    %1496 = vmatprep.mubr.f32.mxu0 0.0
    %1497 = vmatmul.mubr.f32.gmra.mrb[0].mxu0 %v1430
    %v1498 = vpop.f32.mrb[0].mxu0
    %v1499 = vadd.f32 %v1428, %v1498
    %v1500 = vpop.f32.mrb[0].mxu0
    %1501 = vdwg.mxu0
    %v1502 = vld [vmem:[%s19] sm:$0x1]
    %v1504 = vlaneseq
    %v1505 = vshrl.u32 %v1504, 7
    %v1506 = vsub.s32 0, %v1505
    %v1507 = vrot.slane %v1502, %v1506
    %v1509 = vadd.f32 %v1499, %v1507
    %vm1510 = vcmask 254976
    %1511 = vst.msk [vmem:[#allocation29] sm:$0x3] %vm1510, %v1509
    // Predicated region
    $region150: #{tpu_custom_call.1} parent=1 // pred_check
      _
    $region151: #{tpu_custom_call.1} parent=1 // pred_check_branch
      %1513 = sbr.rel (0) target = $region153
    $region152: #{tpu_custom_call.1} parent=1 // pred_region
      %s1515 = ssub.s32 32, 32
      %1516 = vsyncadd [#allocation4], %s1515
      %s1518 = sshll.u32 [#allocation29], 4
      %s1519 = int_to_ptr.vmem [resolvable:$true] %s1518
      %1521 = dma.vmem_to_hbm [thread:$0]  %s1519, 32, %s20, [#allocation4]
    $region153: #{tpu_custom_call.1} parent=1 // pred_fallthru
      _
    // Predicated region
    $region154: #{tpu_custom_call.1} parent=1 // pred_check
      _
    $region155: #{tpu_custom_call.1} parent=1 // pred_check_branch
      %1523 = sbr.rel (0) target = $region157
    $region156: #{tpu_custom_call.1} parent=1 // pred_region
      %1524 = dma.done [#allocation4], 32
    $region157: #{tpu_custom_call.1} parent=1 // pred_fallthru
      _
    %1525 = vsyncpa [#allocation3], 1
    %1526 = vsyncpa [#allocation6], 1
    %1527 = vsyncpa [#allocation9], 1
    %1528 = vsyncpa [#allocation12], 1
    %1529 = vsyncpa [#allocation15], 1
    %1530 = vsyncpa [#allocation18], 1
    %1531 = vsyncpa [#allocation21], 1
    %1532 = vsyncpa [#allocation24], 1
    %1533 = vsyncpa [#allocation27], 1
    %1534 = vsyncpa [#allocation4], 1

</llo_original>
